<compile_context>
chip_gen: v5e
topology: v5e:2x2
jax: 0.10.0
libtpu: 0.0.40
codegen_flags: <defaults>
</compile_context>

<pallas_src>
import jax
import jax.numpy as jnp
from jax.experimental import pallas as pl
from jax.experimental.pallas import tpu as pltpu

EPS = 1e-5  # nn.BatchNorm2d default eps


# --------------------------------------------------------------------------
# In-kernel helpers
# --------------------------------------------------------------------------
def _conv3x3_taps(win, w_ref, th):
    """3x3 'valid' conv on a W-padded window via 9 accumulating MXU dots.

    win:   (th+2, W+2, Cin) value in the compute dtype (row halo + zero cols).
    w_ref: (9, Cin, Cout) ref in the compute dtype (tap-major).
    returns (th*W, Cout) float32 accumulator.

    The (th*W, 9*Cin) im2col patches matrix is never materialized (it was
    ~10x the tile and dominated the VMEM / load-store working set).
    """
    wp = win.shape[1]
    w = wp - 2
    cin = win.shape[2]
    cout = w_ref.shape[2]
    acc = jnp.zeros((th * w, cout), jnp.float32)
    for dy in range(3):
        for dx in range(3):
            sl = win[dy:dy + th, dx:dx + w, :].reshape(th * w, cin)
            acc = acc + jnp.dot(sl, w_ref[dy * 3 + dx],
                                preferred_element_type=jnp.float32)
    return acc


def _tile_stats(acc):
    """Per-tile centered BN partials: (2, C) = (mean, sum((x-mean)^2)), f32."""
    mean_t = jnp.mean(acc, axis=0, keepdims=True)
    d = acc - mean_t
    m2_t = jnp.sum(d * d, axis=0, keepdims=True)
    return jnp.concatenate([mean_t, m2_t], axis=0)


# --------------------------------------------------------------------------
# Pass 1: conv1 (no bias; BN cancels it) + per-tile BN1 partial stats
# --------------------------------------------------------------------------
def _make_conv1_kernel(th):
    def kernel(xb_ref, xs0_ref, xs1_ref, w_ref, y_ref, st_ref):
        # Row-halo window = TH-row body + two 1-row strips of the pre-padded
        # input (all plain BlockSpecs -> fully auto-pipelined).
        win = jnp.concatenate([xb_ref[0], xs0_ref[0], xs1_ref[0]], axis=0)
        acc = _conv3x3_taps(win, w_ref, th)                # (th*W, Cmid) f32
        w = y_ref.shape[2]
        cmid = y_ref.shape[3]
        y_ref[0] = acc.reshape(th, w, cmid).astype(y_ref.dtype)
        st_ref[0, 0] = _tile_stats(acc)
    return kernel


# --------------------------------------------------------------------------
# Pass 2: BN1(precomputed scale/shift) + ReLU + conv2 + per-tile BN2 stats
# --------------------------------------------------------------------------
def _make_conv2_kernel(th, h_total):
    def kernel(yb_ref, yt_ref, yd_ref, a_ref, c_ref, w_ref, y2_ref, st_ref):
        h_idx = pl.program_id(1)
        w = yb_ref.shape[2]
        cmid = yb_ref.shape[3]
        cout = y2_ref.shape[3]
        cdt = w_ref.dtype

        # (th+2, W, Cmid) row-halo window: top strip + body + bottom strip.
        win = jnp.concatenate([yt_ref[0], yb_ref[0], yd_ref[0]],
                              axis=0).astype(jnp.float32)
        # BN1 + ReLU in f32 on the VPU.
        act = jnp.maximum(win * a_ref[...] + c_ref[...], 0.0)
        # Zero halo rows that fall outside the image: conv2's padding is zeros
        # *after* BN+ReLU, so a mask (not stored zero borders) is correct.
        row = h_idx * th - 1 + jax.lax.broadcasted_iota(
            jnp.int32, (th + 2, 1, 1), 0)
        act = jnp.where((row >= 0) & (row <= h_total - 1), act, 0.0).astype(cdt)
        # 1-px zero columns: single small concat on a bounded (th+2, W) tile.
        zc = jnp.zeros((th + 2, 1, cmid), cdt)
        winp = jnp.concatenate([zc, act, zc], axis=1)      # (th+2, W+2, Cmid)

        acc = _conv3x3_taps(winp, w_ref, th)               # (th*W, Cout) f32
        y2_ref[0] = acc.reshape(th, w, cout).astype(y2_ref.dtype)
        st_ref[0, 0] = _tile_stats(acc)
    return kernel


# --------------------------------------------------------------------------
# Pass 3: BN2(affine) + ReLU  (fused NHWC->NCHW transpose / NHWC fallback)
# --------------------------------------------------------------------------
def _bn_relu_t_kernel(y_ref, a_ref, c_ref, o_ref):
    """Emits a channel-major (Cout, th*W) lane-dense tile (no wrapper transpose)."""
    th, w, c = y_ref.shape[1:]
    y = y_ref[0].reshape(th * w, c).astype(jnp.float32)
    o = jnp.maximum(y * a_ref[...] + c_ref[...], 0.0)
    o_ref[0] = o.T.astype(o_ref.dtype)                     # (Cout, th*W)


def _bn_relu_kernel(y_ref, a_ref, c_ref, o_ref):
    """Fallback: BN2 + ReLU in NHWC layout."""
    th, w, c = y_ref.shape[1:]
    y = y_ref[0].reshape(th * w, c).astype(jnp.float32)
    o = jnp.maximum(y * a_ref[...] + c_ref[...], 0.0)
    o_ref[0] = o.reshape(th, w, c).astype(o_ref.dtype)


# --------------------------------------------------------------------------
# Wrapper helpers
# --------------------------------------------------------------------------
def _finalize_bn(st, gamma, beta, rows_per_tile, total):
    """Merge per-tile (mean, M2) partials -> per-channel scale/shift (f32).

    All tiles have the same element count, so Chan's merge reduces to:
      mean = average of tile means
      var  = (sum_t M2_t + R * sum_t (mean_t - mean)^2) / total
    """
    c = st.shape[-1]
    means = st[..., 0, :].reshape(-1, c).astype(jnp.float32)
    m2s = st[..., 1, :].reshape(-1, c).astype(jnp.float32)
    mean = jnp.mean(means, axis=0)
    var = (jnp.sum(m2s, axis=0)
           + rows_per_tile * jnp.sum((means - mean) ** 2, axis=0)) / total
    scale = gamma * jax.lax.rsqrt(var + EPS)
    shift = beta - mean * scale
    return (scale.reshape(1, c).astype(jnp.float32),
            shift.reshape(1, c).astype(jnp.float32))


def _pick_tile_h(hgt, wdt, cin, cmid, cout, budget_bytes=1 << 20):
    """Largest divisor of H whose per-tile working set stays around ~1 MiB,
    keeping the double-buffered pipeline far below v7x's 64 MiB VMEM."""
    per_row = (wdt + 2) * max(cin, cmid, cout) * 4 * 6
    rows = max(1, budget_bytes // max(per_row, 1))
    th = 1
    for d in range(1, hgt + 1):
        if hgt % d == 0 and d <= rows:
            th = d
    return th


# --------------------------------------------------------------------------
# Forward pass
# --------------------------------------------------------------------------
def double_conv2d(x_nchw, params, compute_dtype=jnp.float32, tile_h=None):
    """Forward pass of DoubleConv2D.  x_nchw: (N, Cin, H, W) float32 (NCHW)."""
    w1, b1, g1, be1, w2, b2, g2, be2 = params
    # Conv biases are exactly cancelled by train-mode BN mean subtraction.
    del b1, b2
    N, Cin, H, W = x_nchw.shape
    Cmid = w1.shape[0]
    Cout = w2.shape[0]

    TH = tile_h if tile_h is not None else _pick_tile_h(H, W, Cin, Cmid, Cout)
    if H % TH != 0:
        raise ValueError(f"tile_h={TH} must divide H={H}")
    nH = H // TH
    R = TH * W                 # elements per channel per tile
    M = N * H * W              # elements per channel for BN stats

    # bf16 path also stores the two large intermediates in bf16 (halves HBM
    # traffic); BN statistics stay f32 either way.
    inter_dtype = jnp.bfloat16 if compute_dtype == jnp.bfloat16 else jnp.float32

    # NCHW -> NHWC, 1-px zero pad, single cast to the MXU dtype.
    # TODO(synk): for large inputs fold this transpose+pad into pass 1 instead
    # of paying a wrapper-side HBM round trip on x.
    x = jnp.transpose(x_nchw, (0, 2, 3, 1))
    xpad = jnp.pad(x, ((0, 0), (1, 1), (1, 1), (0, 0))).astype(compute_dtype)

    # PyTorch OIHW -> (9 taps, Cin, Cout), tap-major.
    w1k = jnp.transpose(w1, (2, 3, 1, 0)).reshape(9, Cin, Cmid).astype(compute_dtype)
    w2k = jnp.transpose(w2, (2, 3, 1, 0)).reshape(9, Cmid, Cout).astype(compute_dtype)

    cparams = pltpu.CompilerParams(
        dimension_semantics=("parallel", "parallel"),
        vmem_limit_bytes=32 * 1024 * 1024,
    )

    # ---- pass 1: conv1 (9 accumulating taps) + per-tile BN1 (mean, M2) ----
    y1, st1 = pl.pallas_call(
        _make_conv1_kernel(TH),
        grid_spec=pltpu.PrefetchScalarGridSpec(
            num_scalar_prefetch=0,
            grid=(N, nH),
            in_specs=[
                # TH-row body of the padded input ...
                pl.BlockSpec((1, TH, W + 2, Cin), lambda n, h: (n, h, 0, 0)),
                # ... plus two 1-row halo strips (non-overlapping BlockSpecs of
                # the same array -> stays auto-pipelined, no manual DMA).
                pl.BlockSpec((1, 1, W + 2, Cin),
                             lambda n, h: (n, (h + 1) * TH, 0, 0)),
                pl.BlockSpec((1, 1, W + 2, Cin),
                             lambda n, h: (n, (h + 1) * TH + 1, 0, 0)),
                pl.BlockSpec((9, Cin, Cmid), lambda n, h: (0, 0, 0)),
            ],
            out_specs=[
                pl.BlockSpec((1, TH, W, Cmid), lambda n, h: (n, h, 0, 0)),
                pl.BlockSpec((1, 1, 2, Cmid), lambda n, h: (n, h, 0, 0)),
            ],
        ),
        out_shape=[
            jax.ShapeDtypeStruct((N, H, W, Cmid), inter_dtype),
            jax.ShapeDtypeStruct((N, nH, 2, Cmid), jnp.float32),
        ],
        compiler_params=cparams,
    )(xpad, xpad, xpad, w1k)

    a1, c1 = _finalize_bn(st1, g1, be1, R, M)   # tiny per-channel math

    # ---- pass 2: BN1+ReLU -> conv2 + per-tile BN2 (mean, M2) --------------
    y2, st2 = pl.pallas_call(
        _make_conv2_kernel(TH, H),
        grid_spec=pltpu.PrefetchScalarGridSpec(
            num_scalar_prefetch=0,
            grid=(N, nH),
            in_specs=[
                pl.BlockSpec((1, TH, W, Cmid), lambda n, h: (n, h, 0, 0)),
                # 1-row halo strips, clamped at the image border (out-of-image
                # rows are zeroed in-kernel with an iota mask).
                pl.BlockSpec((1, 1, W, Cmid),
                             lambda n, h: (n, jnp.maximum(h * TH - 1, 0), 0, 0)),
                pl.BlockSpec((1, 1, W, Cmid),
                             lambda n, h: (n, jnp.minimum((h + 1) * TH, H - 1), 0, 0)),
                pl.BlockSpec((1, Cmid), lambda n, h: (0, 0)),
                pl.BlockSpec((1, Cmid), lambda n, h: (0, 0)),
                pl.BlockSpec((9, Cmid, Cout), lambda n, h: (0, 0, 0)),
            ],
            out_specs=[
                pl.BlockSpec((1, TH, W, Cout), lambda n, h: (n, h, 0, 0)),
                pl.BlockSpec((1, 1, 2, Cout), lambda n, h: (n, h, 0, 0)),
            ],
        ),
        out_shape=[
            jax.ShapeDtypeStruct((N, H, W, Cout), inter_dtype),
            jax.ShapeDtypeStruct((N, nH, 2, Cout), jnp.float32),
        ],
        compiler_params=cparams,
    )(y1, y1, y1, a1, c1, w2k)

    a2, c2 = _finalize_bn(st2, g2, be2, R, M)

    # ---- pass 3: BN2 + ReLU (+ fused NHWC->NCHW transpose) ----------------
    # TODO(synk): when this block feeds another Pallas layer, fuse BN2+ReLU into
    # that consumer instead of a third pass over y2.
    if nH == 1 or R % 128 == 0:
        # Lane-dense channel-major tiles -> no wrapper transpose round trip.
        out_flat = pl.pallas_call(
            _bn_relu_t_kernel,
            grid_spec=pltpu.PrefetchScalarGridSpec(
                num_scalar_prefetch=0,
                grid=(N, nH),
                in_specs=[
                    pl.BlockSpec((1, TH, W, Cout), lambda n, h: (n, h, 0, 0)),
                    pl.BlockSpec((1, Cout), lambda n, h: (0, 0)),
                    pl.BlockSpec((1, Cout), lambda n, h: (0, 0)),
                ],
                out_specs=pl.BlockSpec((1, Cout, R), lambda n, h: (n, 0, h)),
            ),
            out_shape=jax.ShapeDtypeStruct((N, Cout, H * W), jnp.float32),
            compiler_params=cparams,
        )(y2, a2, c2)
        return out_flat.reshape(N, Cout, H, W)

    # Fallback when TH*W is not a lane multiple: NHWC out + wrapper transpose.
    out_nhwc = pl.pallas_call(
        _bn_relu_kernel,
        grid_spec=pltpu.PrefetchScalarGridSpec(
            num_scalar_prefetch=0,
            grid=(N, nH),
            in_specs=[
                pl.BlockSpec((1, TH, W, Cout), lambda n, h: (n, h, 0, 0)),
                pl.BlockSpec((1, Cout), lambda n, h: (0, 0)),
                pl.BlockSpec((1, Cout), lambda n, h: (0, 0)),
            ],
            out_specs=pl.BlockSpec((1, TH, W, Cout), lambda n, h: (n, h, 0, 0)),
        ),
        out_shape=jax.ShapeDtypeStruct((N, H, W, Cout), jnp.float32),
        compiler_params=cparams,
    )(y2, a2, c2)
    return jnp.transpose(out_nhwc, (0, 3, 1, 2))


# --------------------------------------------------------------------------
# Pure-JAX reference matching PyTorch semantics (training-mode BN)
# --------------------------------------------------------------------------
def reference(x_nchw, params):
    w1, b1, g1, be1, w2, b2, g2, be2 = params

    def conv(x, w, b):
        y = jax.lax.conv_general_dilated(
            x, w, window_strides=(1, 1), padding=((1, 1), (1, 1)),
            dimension_numbers=('NCHW', 'OIHW', 'NCHW'))
        return y + b[None, :, None, None]

    def bn_relu(x, g, be):
        mean = jnp.mean(x, axis=(0, 2, 3), keepdims=True)
        var = jnp.mean((x - mean) ** 2, axis=(0, 2, 3), keepdims=True)
        y = (x - mean) * jax.lax.rsqrt(var + EPS) \
            * g[None, :, None, None] + be[None, :, None, None]
        return jnp.maximum(y, 0.0)

    h = bn_relu(conv(x_nchw, w1, b1), g1, be1)
    return bn_relu(conv(h, w2, b2), g2, be2)


if __name__ == "__main__":
    # Small shapes consistent with DoubleConv2D(in_channels=4, out_channels=8)
    N, Cin, H, W = 2, 4, 16, 16
    Cmid = Cout = 8

    key = jax.random.PRNGKey(0)
    ks = jax.random.split(key, 9)
    x = jax.random.normal(ks[0], (N, Cin, H, W), jnp.float32)

    w1 = 0.1 * jax.random.normal(ks[1], (Cmid, Cin, 3, 3), jnp.float32)
    b1 = 0.1 * jax.random.normal(ks[2], (Cmid,), jnp.float32)
    g1 = 1.0 + 0.1 * jax.random.normal(ks[3], (Cmid,), jnp.float32)
    be1 = 0.1 * jax.random.normal(ks[4], (Cmid,), jnp.float32)
    w2 = 0.1 * jax.random.normal(ks[5], (Cout, Cmid, 3, 3), jnp.float32)
    b2 = 0.1 * jax.random.normal(ks[6], (Cout,), jnp.float32)
    g2 = 1.0 + 0.1 * jax.random.normal(ks[7], (Cout,), jnp.float32)
    be2 = 0.1 * jax.random.normal(ks[8], (Cout,), jnp.float32)

    params = (w1, b1, g1, be1, w2, b2, g2, be2)

    ref = jax.block_until_ready(reference(x, params))

    # f32 path, 8-row tiles -> grid (2, 2), fused-transpose lane-dense pass 3.
    out = jax.block_until_ready(double_conv2d(x, params, tile_h=8))
    assert out.shape == (N, Cout, H, W)
    err = jnp.max(jnp.abs(out - ref))
    assert jnp.allclose(out, ref, atol=2e-4, rtol=2e-4), \
        f"f32 tile_h=8 max abs diff {err}"

    # f32 path, 4-row tiles -> exercises the NHWC fallback for pass 3.
    out4 = jax.block_until_ready(double_conv2d(x, params, tile_h=4))
    err4 = jnp.max(jnp.abs(out4 - ref))
    assert jnp.allclose(out4, ref, atol=2e-4, rtol=2e-4), \
        f"f32 tile_h=4 max abs diff {err4}"

    # bf16 MXU path with bf16 y1/y2 intermediates (f32 stats): loose check.
    out_bf16 = jax.block_until_ready(
        double_conv2d(x, params, compute_dtype=jnp.bfloat16, tile_h=8))
    errb = jnp.max(jnp.abs(out_bf16 - ref))
    assert jnp.allclose(out_bf16, ref, atol=1e-1, rtol=1e-1), \
        f"bf16 max abs diff {errb}"

    print("KERNEL_OK")
</pallas_src>

<mosaic_0001>
module attributes {stable_mosaic.version = 11 : i64} {
  func.func @kernel(%arg0: i32, %arg1: i32, %arg2: memref<1x8x18x4xf32, #tpu.memory_space<vmem>>, %arg3: memref<1x1x18x4xf32, #tpu.memory_space<vmem>>, %arg4: memref<1x1x18x4xf32, #tpu.memory_space<vmem>>, %arg5: memref<9x4x8xf32, #tpu.memory_space<vmem>>, %arg6: memref<1x8x16x8xf32, #tpu.memory_space<vmem>>, %arg7: memref<1x1x2x8xf32, #tpu.memory_space<vmem>>) attributes {dimension_semantics = [#tpu.dimension_semantics<parallel>, #tpu.dimension_semantics<parallel>], iteration_bounds = array<i64: 2, 2>, scalar_prefetch = 0 : i64, scratch_operands = 0 : i64, tpu.core_type = #tpu.core_type<tc>, window_params = [{transform_indices = @transform_0, window_bounds = array<i64: 1, 8, 18, 4>}, {transform_indices = @transform_1, window_bounds = array<i64: 1, 1, 18, 4>}, {transform_indices = @transform_2, window_bounds = array<i64: 1, 1, 18, 4>}, {pipeline_mode = #tpu.pipeline_mode<synchronous>, transform_indices = @transform_3, window_bounds = array<i64: 9, 4, 8>}, {transform_indices = @transform_4, window_bounds = array<i64: 1, 8, 16, 8>}, {transform_indices = @transform_5, window_bounds = array<i64: 1, 1, 2, 8>}]} {
    %c0 = arith.constant 0 : index
    %c0_0 = arith.constant 0 : index
    %c0_1 = arith.constant 0 : index
    %c0_2 = arith.constant 0 : index
    %0 = vector.load %arg2[%c0, %c0_0, %c0_1, %c0_2] : memref<1x8x18x4xf32, #tpu.memory_space<vmem>>, vector<1x8x18x4xf32>
    %1 = vector.shape_cast %0 : vector<1x8x18x4xf32> to vector<8x18x4xf32>
    %c0_3 = arith.constant 0 : index
    %c0_4 = arith.constant 0 : index
    %c0_5 = arith.constant 0 : index
    %c0_6 = arith.constant 0 : index
    %2 = vector.load %arg3[%c0_3, %c0_4, %c0_5, %c0_6] : memref<1x1x18x4xf32, #tpu.memory_space<vmem>>, vector<1x1x18x4xf32>
    %3 = vector.shape_cast %2 : vector<1x1x18x4xf32> to vector<1x18x4xf32>
    %c0_7 = arith.constant 0 : index
    %c0_8 = arith.constant 0 : index
    %c0_9 = arith.constant 0 : index
    %c0_10 = arith.constant 0 : index
    %4 = vector.load %arg4[%c0_7, %c0_8, %c0_9, %c0_10] : memref<1x1x18x4xf32, #tpu.memory_space<vmem>>, vector<1x1x18x4xf32>
    %5 = vector.shape_cast %4 : vector<1x1x18x4xf32> to vector<1x18x4xf32>
    %6 = tpu.concatenate %1, %3, %5 in 0 : vector<8x18x4xf32>, vector<1x18x4xf32>, vector<1x18x4xf32> -> vector<10x18x4xf32>
    %cst = arith.constant 0.000000e+00 : f32
    %7 = vector.broadcast %cst : f32 to vector<128x8xf32>
    %8 = vector.extract_strided_slice %6 {offsets = [0, 0, 0], sizes = [8, 16, 4], strides = [1, 1, 1]} : vector<10x18x4xf32> to vector<8x16x4xf32>
    %9 = vector.shape_cast %8 : vector<8x16x4xf32> to vector<128x4xf32>
    %c0_11 = arith.constant 0 : index
    %c0_12 = arith.constant 0 : index
    %c0_13 = arith.constant 0 : index
    %10 = vector.load %arg5[%c0_11, %c0_12, %c0_13] : memref<9x4x8xf32, #tpu.memory_space<vmem>>, vector<1x4x8xf32>
    %11 = vector.shape_cast %10 : vector<1x4x8xf32> to vector<4x8xf32>
    %cst_14 = arith.constant dense<0.000000e+00> : vector<128x8xf32>
    %12 = tpu.matmul %9, %11, %cst_14 {dimension_numbers = #tpu.dot_dimension_numbers<[1], [0], [0], [1], [0, 0, 1, 1], [], []>} : vector<128x4xf32>, vector<4x8xf32>, vector<128x8xf32> -> vector<128x8xf32>
    %13 = arith.addf %7, %12 : vector<128x8xf32>
    %14 = vector.extract_strided_slice %6 {offsets = [0, 1, 0], sizes = [8, 16, 4], strides = [1, 1, 1]} : vector<10x18x4xf32> to vector<8x16x4xf32>
    %15 = vector.shape_cast %14 : vector<8x16x4xf32> to vector<128x4xf32>
    %c1 = arith.constant 1 : index
    %c0_15 = arith.constant 0 : index
    %c0_16 = arith.constant 0 : index
    %16 = vector.load %arg5[%c1, %c0_15, %c0_16] : memref<9x4x8xf32, #tpu.memory_space<vmem>>, vector<1x4x8xf32>
    %17 = vector.shape_cast %16 : vector<1x4x8xf32> to vector<4x8xf32>
    %cst_17 = arith.constant dense<0.000000e+00> : vector<128x8xf32>
    %18 = tpu.matmul %15, %17, %cst_17 {dimension_numbers = #tpu.dot_dimension_numbers<[1], [0], [0], [1], [0, 0, 1, 1], [], []>} : vector<128x4xf32>, vector<4x8xf32>, vector<128x8xf32> -> vector<128x8xf32>
    %19 = arith.addf %13, %18 : vector<128x8xf32>
    %20 = vector.extract_strided_slice %6 {offsets = [0, 2, 0], sizes = [8, 16, 4], strides = [1, 1, 1]} : vector<10x18x4xf32> to vector<8x16x4xf32>
    %21 = vector.shape_cast %20 : vector<8x16x4xf32> to vector<128x4xf32>
    %c2 = arith.constant 2 : index
    %c0_18 = arith.constant 0 : index
    %c0_19 = arith.constant 0 : index
    %22 = vector.load %arg5[%c2, %c0_18, %c0_19] : memref<9x4x8xf32, #tpu.memory_space<vmem>>, vector<1x4x8xf32>
    %23 = vector.shape_cast %22 : vector<1x4x8xf32> to vector<4x8xf32>
    %cst_20 = arith.constant dense<0.000000e+00> : vector<128x8xf32>
    %24 = tpu.matmul %21, %23, %cst_20 {dimension_numbers = #tpu.dot_dimension_numbers<[1], [0], [0], [1], [0, 0, 1, 1], [], []>} : vector<128x4xf32>, vector<4x8xf32>, vector<128x8xf32> -> vector<128x8xf32>
    %25 = arith.addf %19, %24 : vector<128x8xf32>
    %26 = vector.extract_strided_slice %6 {offsets = [1, 0, 0], sizes = [8, 16, 4], strides = [1, 1, 1]} : vector<10x18x4xf32> to vector<8x16x4xf32>
    %27 = vector.shape_cast %26 : vector<8x16x4xf32> to vector<128x4xf32>
    %c3 = arith.constant 3 : index
    %c0_21 = arith.constant 0 : index
    %c0_22 = arith.constant 0 : index
    %28 = vector.load %arg5[%c3, %c0_21, %c0_22] : memref<9x4x8xf32, #tpu.memory_space<vmem>>, vector<1x4x8xf32>
    %29 = vector.shape_cast %28 : vector<1x4x8xf32> to vector<4x8xf32>
    %cst_23 = arith.constant dense<0.000000e+00> : vector<128x8xf32>
    %30 = tpu.matmul %27, %29, %cst_23 {dimension_numbers = #tpu.dot_dimension_numbers<[1], [0], [0], [1], [0, 0, 1, 1], [], []>} : vector<128x4xf32>, vector<4x8xf32>, vector<128x8xf32> -> vector<128x8xf32>
    %31 = arith.addf %25, %30 : vector<128x8xf32>
    %32 = vector.extract_strided_slice %6 {offsets = [1, 1, 0], sizes = [8, 16, 4], strides = [1, 1, 1]} : vector<10x18x4xf32> to vector<8x16x4xf32>
    %33 = vector.shape_cast %32 : vector<8x16x4xf32> to vector<128x4xf32>
    %c4 = arith.constant 4 : index
    %c0_24 = arith.constant 0 : index
    %c0_25 = arith.constant 0 : index
    %34 = vector.load %arg5[%c4, %c0_24, %c0_25] : memref<9x4x8xf32, #tpu.memory_space<vmem>>, vector<1x4x8xf32>
    %35 = vector.shape_cast %34 : vector<1x4x8xf32> to vector<4x8xf32>
    %cst_26 = arith.constant dense<0.000000e+00> : vector<128x8xf32>
    %36 = tpu.matmul %33, %35, %cst_26 {dimension_numbers = #tpu.dot_dimension_numbers<[1], [0], [0], [1], [0, 0, 1, 1], [], []>} : vector<128x4xf32>, vector<4x8xf32>, vector<128x8xf32> -> vector<128x8xf32>
    %37 = arith.addf %31, %36 : vector<128x8xf32>
    %38 = vector.extract_strided_slice %6 {offsets = [1, 2, 0], sizes = [8, 16, 4], strides = [1, 1, 1]} : vector<10x18x4xf32> to vector<8x16x4xf32>
    %39 = vector.shape_cast %38 : vector<8x16x4xf32> to vector<128x4xf32>
    %c5 = arith.constant 5 : index
    %c0_27 = arith.constant 0 : index
    %c0_28 = arith.constant 0 : index
    %40 = vector.load %arg5[%c5, %c0_27, %c0_28] : memref<9x4x8xf32, #tpu.memory_space<vmem>>, vector<1x4x8xf32>
    %41 = vector.shape_cast %40 : vector<1x4x8xf32> to vector<4x8xf32>
    %cst_29 = arith.constant dense<0.000000e+00> : vector<128x8xf32>
    %42 = tpu.matmul %39, %41, %cst_29 {dimension_numbers = #tpu.dot_dimension_numbers<[1], [0], [0], [1], [0, 0, 1, 1], [], []>} : vector<128x4xf32>, vector<4x8xf32>, vector<128x8xf32> -> vector<128x8xf32>
    %43 = arith.addf %37, %42 : vector<128x8xf32>
    %44 = vector.extract_strided_slice %6 {offsets = [2, 0, 0], sizes = [8, 16, 4], strides = [1, 1, 1]} : vector<10x18x4xf32> to vector<8x16x4xf32>
    %45 = vector.shape_cast %44 : vector<8x16x4xf32> to vector<128x4xf32>
    %c6 = arith.constant 6 : index
    %c0_30 = arith.constant 0 : index
    %c0_31 = arith.constant 0 : index
    %46 = vector.load %arg5[%c6, %c0_30, %c0_31] : memref<9x4x8xf32, #tpu.memory_space<vmem>>, vector<1x4x8xf32>
    %47 = vector.shape_cast %46 : vector<1x4x8xf32> to vector<4x8xf32>
    %cst_32 = arith.constant dense<0.000000e+00> : vector<128x8xf32>
    %48 = tpu.matmul %45, %47, %cst_32 {dimension_numbers = #tpu.dot_dimension_numbers<[1], [0], [0], [1], [0, 0, 1, 1], [], []>} : vector<128x4xf32>, vector<4x8xf32>, vector<128x8xf32> -> vector<128x8xf32>
    %49 = arith.addf %43, %48 : vector<128x8xf32>
    %50 = vector.extract_strided_slice %6 {offsets = [2, 1, 0], sizes = [8, 16, 4], strides = [1, 1, 1]} : vector<10x18x4xf32> to vector<8x16x4xf32>
    %51 = vector.shape_cast %50 : vector<8x16x4xf32> to vector<128x4xf32>
    %c7 = arith.constant 7 : index
    %c0_33 = arith.constant 0 : index
    %c0_34 = arith.constant 0 : index
    %52 = vector.load %arg5[%c7, %c0_33, %c0_34] : memref<9x4x8xf32, #tpu.memory_space<vmem>>, vector<1x4x8xf32>
    %53 = vector.shape_cast %52 : vector<1x4x8xf32> to vector<4x8xf32>
    %cst_35 = arith.constant dense<0.000000e+00> : vector<128x8xf32>
    %54 = tpu.matmul %51, %53, %cst_35 {dimension_numbers = #tpu.dot_dimension_numbers<[1], [0], [0], [1], [0, 0, 1, 1], [], []>} : vector<128x4xf32>, vector<4x8xf32>, vector<128x8xf32> -> vector<128x8xf32>
    %55 = arith.addf %49, %54 : vector<128x8xf32>
    %56 = vector.extract_strided_slice %6 {offsets = [2, 2, 0], sizes = [8, 16, 4], strides = [1, 1, 1]} : vector<10x18x4xf32> to vector<8x16x4xf32>
    %57 = vector.shape_cast %56 : vector<8x16x4xf32> to vector<128x4xf32>
    %c8 = arith.constant 8 : index
    %c0_36 = arith.constant 0 : index
    %c0_37 = arith.constant 0 : index
    %58 = vector.load %arg5[%c8, %c0_36, %c0_37] : memref<9x4x8xf32, #tpu.memory_space<vmem>>, vector<1x4x8xf32>
    %59 = vector.shape_cast %58 : vector<1x4x8xf32> to vector<4x8xf32>
    %cst_38 = arith.constant dense<0.000000e+00> : vector<128x8xf32>
    %60 = tpu.matmul %57, %59, %cst_38 {dimension_numbers = #tpu.dot_dimension_numbers<[1], [0], [0], [1], [0, 0, 1, 1], [], []>} : vector<128x4xf32>, vector<4x8xf32>, vector<128x8xf32> -> vector<128x8xf32>
    %61 = arith.addf %55, %60 : vector<128x8xf32>
    %62 = vector.shape_cast %61 : vector<128x8xf32> to vector<8x16x8xf32>
    %c0_39 = arith.constant 0 : index
    %c0_40 = arith.constant 0 : index
    %c0_41 = arith.constant 0 : index
    %c0_42 = arith.constant 0 : index
    %63 = vector.load %arg6[%c0_39, %c0_40, %c0_41, %c0_42] : memref<1x8x16x8xf32, #tpu.memory_space<vmem>>, vector<1x8x16x8xf32>
    %64 = vector.shape_cast %63 : vector<1x8x16x8xf32> to vector<8x16x8xf32>
    %65 = vector.shape_cast %62 : vector<8x16x8xf32> to vector<1x8x16x8xf32>
    tpu.vector_store %arg6[%c0_39, %c0_40, %c0_41, %c0_42], %65 {strides = array<i32>} : memref<1x8x16x8xf32, #tpu.memory_space<vmem>>, vector<1x8x16x8xf32>,
    %cst_43 = arith.constant dense<0.000000e+00> : vector<8xf32>
    %66 = vector.multi_reduction <add>, %61, %cst_43 [0] : vector<128x8xf32> to vector<8xf32>
    %67 = vector.shape_cast %66 : vector<8xf32> to vector<1x8xf32>
    %cst_44 = arith.constant 1.280000e+02 : f32
    %68 = vector.broadcast %cst_44 : f32 to vector<1x8xf32>
    %69 = arith.divf %67, %68 : vector<1x8xf32>
    %70 = vector.broadcast %69 : vector<1x8xf32> to vector<128x8xf32>
    %71 = arith.subf %61, %70 : vector<128x8xf32>
    %72 = arith.mulf %71, %71 : vector<128x8xf32>
    %cst_45 = arith.constant dense<0.000000e+00> : vector<8xf32>
    %73 = vector.multi_reduction <add>, %72, %cst_45 [0] : vector<128x8xf32> to vector<8xf32>
    %74 = vector.shape_cast %73 : vector<8xf32> to vector<1x8xf32>
    %75 = tpu.concatenate %69, %74 in 0 : vector<1x8xf32>, vector<1x8xf32> -> vector<2x8xf32>
    %c0_46 = arith.constant 0 : index
    %c0_47 = arith.constant 0 : index
    %c0_48 = arith.constant 0 : index
    %c0_49 = arith.constant 0 : index
    %76 = vector.load %arg7[%c0_46, %c0_47, %c0_48, %c0_49] : memref<1x1x2x8xf32, #tpu.memory_space<vmem>>, vector<1x1x2x8xf32>
    %77 = vector.shape_cast %76 : vector<1x1x2x8xf32> to vector<2x8xf32>
    %78 = vector.shape_cast %75 : vector<2x8xf32> to vector<1x1x2x8xf32>
    tpu.vector_store %arg7[%c0_46, %c0_47, %c0_48, %c0_49], %78 {strides = array<i32>} : memref<1x1x2x8xf32, #tpu.memory_space<vmem>>, vector<1x1x2x8xf32>,
    return
  }
  func.func @transform_0(%arg0: i32, %arg1: i32) -> (i32, i32, i32, i32) {
    %c0_i32 = arith.constant 0 : i32
    %c0_i32_0 = arith.constant 0 : i32
    %c0_i32_1 = arith.constant 0 : i32
    return %arg0, %arg1, %c0_i32, %c0_i32_0 : i32, i32, i32, i32
  }
  func.func @transform_1(%arg0: i32, %arg1: i32) -> (i32, i32, i32, i32) {
    %c1_i32 = arith.constant 1 : i32
    %0 = arith.addi %arg1, %c1_i32 : i32
    %c8_i32 = arith.constant 8 : i32
    %1 = arith.muli %0, %c8_i32 : i32
    %c0_i32 = arith.constant 0 : i32
    %c0_i32_0 = arith.constant 0 : i32
    %c0_i32_1 = arith.constant 0 : i32
    return %arg0, %1, %c0_i32, %c0_i32_0 : i32, i32, i32, i32
  }
  func.func @transform_2(%arg0: i32, %arg1: i32) -> (i32, i32, i32, i32) {
    %c1_i32 = arith.constant 1 : i32
    %0 = arith.addi %arg1, %c1_i32 : i32
    %c8_i32 = arith.constant 8 : i32
    %1 = arith.muli %0, %c8_i32 : i32
    %c1_i32_0 = arith.constant 1 : i32
    %2 = arith.addi %1, %c1_i32_0 : i32
    %c0_i32 = arith.constant 0 : i32
    %c0_i32_1 = arith.constant 0 : i32
    %c0_i32_2 = arith.constant 0 : i32
    return %arg0, %2, %c0_i32, %c0_i32_1 : i32, i32, i32, i32
  }
  func.func @transform_3(%arg0: i32, %arg1: i32) -> (i32, i32, i32) {
    %c0_i32 = arith.constant 0 : i32
    %c0_i32_0 = arith.constant 0 : i32
    %c0_i32_1 = arith.constant 0 : i32
    %c0_i32_2 = arith.constant 0 : i32
    return %c0_i32, %c0_i32_0, %c0_i32_1 : i32, i32, i32
  }
  func.func @transform_4(%arg0: i32, %arg1: i32) -> (i32, i32, i32, i32) {
    %c0_i32 = arith.constant 0 : i32
    %c0_i32_0 = arith.constant 0 : i32
    %c0_i32_1 = arith.constant 0 : i32
    return %arg0, %arg1, %c0_i32, %c0_i32_0 : i32, i32, i32, i32
  }
  func.func @transform_5(%arg0: i32, %arg1: i32) -> (i32, i32, i32, i32) {
    %c0_i32 = arith.constant 0 : i32
    %c0_i32_0 = arith.constant 0 : i32
    %c0_i32_1 = arith.constant 0 : i32
    return %arg0, %arg1, %c0_i32, %c0_i32_0 : i32, i32, i32, i32
  }
}

</mosaic_0001>

<llo_original>
// kernel: tpu_custom_call.1
$region0: #{tpu_custom_call.1}
  #allocation0 [shape = 'u32[]', space=smem, size = 0x4, offset = 0x4, fixed_abs, tag = 'smem constant byte address 0x4 - core index']
  #allocation1 [shape = 'u32[72,128]{1,0:T(1,128)}', space=vmem, size = 0x9000, scoped, tag = 'internal scratch']
  %s0 = inlined_call_operand.vmem [shape: f32[2,18,18,4], index: 0, kind: input, shape index: {}]
  %s1 = inlined_call_operand.vmem [shape: f32[2,18,18,4], index: 1, kind: input, shape index: {}]
  %s2 = inlined_call_operand.vmem [shape: f32[2,18,18,4], index: 2, kind: input, shape index: {}]
  %s3 = inlined_call_operand.vmem [shape: f32[9,4,8], index: 3, kind: input, shape index: {}]
  %s4 = inlined_call_operand.vmem [shape: f32[2,16,16,8], index: 4, kind: output, shape index: {0}]
  %s5 = inlined_call_operand.hbm [shape: f32[2,2,2,8], index: 5, kind: output, shape index: {1}]
  %6 = xla_tuple %s4, %s5
  %s7 = sld [smem:[#allocation0]]
  $region57: #{tpu_custom_call.1} parent=0
    _
  %s9 = ssub.s32 1, %s7
  %s10 = scalar_select 0, %s9, %s7
  $region1: #{tpu_custom_call.1} parent=0
    #allocation2 [shape = 'u8[2048]{0}', space=vmem, size = 0x800, scoped, tag = 'output window, operand 1']
    #allocation3 [shape = 's32[2]{0}', space=sflag, size = 0x8, scoped, tag = 'scoped memory for tpu_custom_call.1']
    %11 = vsyncpa [#allocation3], 0
    %s12 = scalar_lea.sflag [#allocation3], 1
    %13 = vsyncpa %s12, 0
    loop: start=0, step=1, limit=6
    $region2: #{tpu_custom_call.1} parent=1 // loop_pre_header
      _
    $region3: #{tpu_custom_call.1} parent=1 // loop_header
      %s15 = sphi 0, %s19
      %p16 = scmp.ge.s32.totalorder %s15, 6
      %s22 = sphi 0, %s34
      %s23 = sphi 0, %s30
      %s24 = sphi 0, %s22
      %s25 = sphi 0, %s23
      %s26 = sphi 0, %s24
      %s27 = sphi 0, %s25
      %s39 = sphi 0, %s41
      %s42 = sphi 0, %s39
      %s43 = sphi 0, %s42
      %s59 = sphi 0, %s43
      %s71 = sphi 0, %s73
      %s74 = sphi 0, %s71
      %s75 = sphi 0, %s74
      %s91 = sphi 0, %s75
      %s105 = sphi 0, %s107
      %s108 = sphi 0, %s105
      %s109 = sphi 0, %s108
      %s125 = sphi 0, %s109
      %s129 = sphi 0, %s129
      %s131 = sphi 0, %s129
      %s132 = sphi 0, %s131
      %s146 = sphi 0, %s132
      %s154 = sphi 0, %s156
      %s157 = sphi 0, %s154
      %s158 = sphi 0, %s157
      %s174 = sphi 0, %s158
      %s182 = sphi 0, %s184
      %s185 = sphi 0, %s182
      %s186 = sphi 0, %s185
      %s202 = sphi 0, %s186
    $region4: #{tpu_custom_call.1} parent=1 // loop_header_branch
      %18 = sbr.rel (%p16) target = $region8
    $region5: #{tpu_custom_call.1} parent=1 // loop_body
      %s20 = ssub.s32 %s15, 1
      %s21 = ssub.s32 %s15, 2
      %s28 = sadd.s32 1, %s23
      %p29 = scmp.ge.s32.totalorder %s28, 2
      %s30 = scalar_select %p29, 0, %s28
      %s31 = sadd.s32 1, %s22
      %s32 = scalar_select %p29, %s31, %s22
      %p33 = scmp.ge.s32.totalorder %s32, 2
      %s34 = scalar_select %p33, 0, %s32
      %s35 = ssub.s32 %s22, %s34
      %s36 = ssub.s32 %s23, %s30
      %s37 = sor.u32 %s35, %s36
      %p38 = scmp.eq.s32.totalorder %s37, 0
      %s40 = sadd.s32 %s39, 1
      %s41 = scalar_select %p38, %s39, %s40
      %p44 = pneg %p38
      %p45 = scmp.eq.s32.totalorder %s15, 3
      %p46 = por %p44, %p45
      %p47 = scmp.ne.s32.totalorder %s39, %s42
      %p48 = scmp.eq.s32.totalorder %s15, 0
      %p49 = por %p47, %p48
      %p50 = scmp.ne.s32.totalorder %s39, %s42
      %p51 = scmp.eq.s32.totalorder %s20, 3
      %p52 = por %p50, %p51
      %p53 = scmp.ne.s32.totalorder %s42, %s43
      %p54 = scmp.eq.s32.totalorder %s20, 0
      %p55 = por %p53, %p54
      %p56 = scmp.ne.s32.totalorder %s42, %s43
      %p57 = scmp.eq.s32.totalorder %s21, 3
      %p58 = por %p56, %p57
      %p60 = scmp.ne.s32.totalorder %s43, %s59
      %p61 = scmp.eq.s32.totalorder %s21, 0
      %p62 = por %p60, %p61
      %s63 = sadd.s32 %s23, 1
      %s64 = smul.u32 %s63, 8
      %s65 = sadd.s32 %s30, 1
      %s66 = smul.u32 %s65, 8
      %s67 = ssub.s32 %s22, %s34
      %s68 = ssub.s32 %s64, %s66
      %s69 = sor.u32 %s67, %s68
      %p70 = scmp.eq.s32.totalorder %s69, 0
      %s72 = sadd.s32 %s71, 1
      %s73 = scalar_select %p70, %s71, %s72
      %p76 = pneg %p70
      %p77 = scmp.eq.s32.totalorder %s15, 3
      %p78 = por %p76, %p77
      %p79 = scmp.ne.s32.totalorder %s71, %s74
      %p80 = scmp.eq.s32.totalorder %s15, 0
      %p81 = por %p79, %p80
      %p82 = scmp.ne.s32.totalorder %s71, %s74
      %p83 = scmp.eq.s32.totalorder %s20, 3
      %p84 = por %p82, %p83
      %p85 = scmp.ne.s32.totalorder %s74, %s75
      %p86 = scmp.eq.s32.totalorder %s20, 0
      %p87 = por %p85, %p86
      %p88 = scmp.ne.s32.totalorder %s74, %s75
      %p89 = scmp.eq.s32.totalorder %s21, 3
      %p90 = por %p88, %p89
      %p92 = scmp.ne.s32.totalorder %s75, %s91
      %p93 = scmp.eq.s32.totalorder %s21, 0
      %p94 = por %p92, %p93
      %s95 = sadd.s32 %s23, 1
      %s96 = smul.u32 %s95, 8
      %s97 = sadd.s32 %s96, 1
      %s98 = sadd.s32 %s30, 1
      %s99 = smul.u32 %s98, 8
      %s100 = sadd.s32 %s99, 1
      %s101 = ssub.s32 %s22, %s34
      %s102 = ssub.s32 %s97, %s100
      %s103 = sor.u32 %s101, %s102
      %p104 = scmp.eq.s32.totalorder %s103, 0
      %s106 = sadd.s32 %s105, 1
      %s107 = scalar_select %p104, %s105, %s106
      %p110 = pneg %p104
      %p111 = scmp.eq.s32.totalorder %s15, 3
      %p112 = por %p110, %p111
      %p113 = scmp.ne.s32.totalorder %s105, %s108
      %p114 = scmp.eq.s32.totalorder %s15, 0
      %p115 = por %p113, %p114
      %p116 = scmp.ne.s32.totalorder %s105, %s108
      %p117 = scmp.eq.s32.totalorder %s20, 3
      %p118 = por %p116, %p117
      %p119 = scmp.ne.s32.totalorder %s108, %s109
      %p120 = scmp.eq.s32.totalorder %s20, 0
      %p121 = por %p119, %p120
      %p122 = scmp.ne.s32.totalorder %s108, %s109
      %p123 = scmp.eq.s32.totalorder %s21, 3
      %p124 = por %p122, %p123
      %p126 = scmp.ne.s32.totalorder %s109, %s125
      %p127 = scmp.eq.s32.totalorder %s21, 0
      %p128 = por %p126, %p127
      %s130 = sadd.s32 %s129, 1
      %p133 = scmp.eq.s32.totalorder %s15, 3
      %p134 = scmp.ne.s32.totalorder %s129, %s131
      %p135 = scmp.eq.s32.totalorder %s15, 0
      %p136 = por %p134, %p135
      %p137 = scmp.ne.s32.totalorder %s129, %s131
      %p138 = scmp.eq.s32.totalorder %s20, 3
      %p139 = por %p137, %p138
      %p140 = scmp.ne.s32.totalorder %s131, %s132
      %p141 = scmp.eq.s32.totalorder %s20, 0
      %p142 = por %p140, %p141
      %p143 = scmp.ne.s32.totalorder %s131, %s132
      %p144 = scmp.eq.s32.totalorder %s21, 3
      %p145 = por %p143, %p144
      %p147 = scmp.ne.s32.totalorder %s132, %s146
      %p148 = scmp.eq.s32.totalorder %s21, 0
      %p149 = por %p147, %p148
      %s150 = ssub.s32 %s22, %s34
      %s151 = ssub.s32 %s23, %s30
      %s152 = sor.u32 %s150, %s151
      %p153 = scmp.eq.s32.totalorder %s152, 0
      %s155 = sadd.s32 %s154, 1
      %s156 = scalar_select %p153, %s154, %s155
      %p159 = pneg %p153
      %p160 = scmp.eq.s32.totalorder %s15, 3
      %p161 = por %p159, %p160
      %p162 = scmp.ne.s32.totalorder %s154, %s157
      %p163 = scmp.eq.s32.totalorder %s15, 0
      %p164 = por %p162, %p163
      %p165 = scmp.ne.s32.totalorder %s154, %s157
      %p166 = scmp.eq.s32.totalorder %s20, 3
      %p167 = por %p165, %p166
      %p168 = scmp.ne.s32.totalorder %s157, %s158
      %p169 = scmp.eq.s32.totalorder %s20, 0
      %p170 = por %p168, %p169
      %p171 = scmp.ne.s32.totalorder %s157, %s158
      %p172 = scmp.eq.s32.totalorder %s21, 3
      %p173 = por %p171, %p172
      %p175 = scmp.ne.s32.totalorder %s158, %s174
      %p176 = scmp.eq.s32.totalorder %s21, 0
      %p177 = por %p175, %p176
      %s178 = ssub.s32 %s22, %s34
      %s179 = ssub.s32 %s23, %s30
      %s180 = sor.u32 %s178, %s179
      %p181 = scmp.eq.s32.totalorder %s180, 0
      %s183 = sadd.s32 %s182, 1
      %s184 = scalar_select %p181, %s182, %s183
      %p187 = pneg %p181
      %p188 = scmp.eq.s32.totalorder %s15, 3
      %p189 = por %p187, %p188
      %p190 = scmp.ne.s32.totalorder %s182, %s185
      %p191 = scmp.eq.s32.totalorder %s15, 0
      %p192 = por %p190, %p191
      %p193 = scmp.ne.s32.totalorder %s182, %s185
      %p194 = scmp.eq.s32.totalorder %s20, 3
      %p195 = por %p193, %p194
      %p196 = scmp.ne.s32.totalorder %s185, %s186
      %p197 = scmp.eq.s32.totalorder %s20, 0
      %p198 = por %p196, %p197
      %p199 = scmp.ne.s32.totalorder %s185, %s186
      %p200 = scmp.eq.s32.totalorder %s21, 3
      %p201 = por %p199, %p200
      %p203 = scmp.ne.s32.totalorder %s186, %s202
      %p204 = scmp.eq.s32.totalorder %s21, 0
      %p205 = por %p203, %p204
      %p206 = scmp.le.s32.totalorder 1, %s15
      %p207 = scmp.lt.s32.totalorder %s15, 5
      %p208 = pnand %p206, %p207
      %p209 = pneg %p208
      // Predicated region
      $region9: #{tpu_custom_call.1} parent=5 // pred_check
        _
      $region10: #{tpu_custom_call.1} parent=5 // pred_check_branch
        %211 = sbr.rel (%p208) target = $region12
      $region11: #{tpu_custom_call.1} parent=5 // pred_region
        %s212 = ssub.s32 %s15, 1
        // Predicated region
        $region13: #{tpu_custom_call.1} parent=11 // pred_check
          %p213 = pneg %p142
        $region14: #{tpu_custom_call.1} parent=11 // pred_check_branch
          %215 = sbr.rel (%p213) target = $region16
        $region15: #{tpu_custom_call.1} parent=11 // pred_region
          _
        $region16: #{tpu_custom_call.1} parent=11 // pred_fallthru
          _
      $region12: #{tpu_custom_call.1} parent=5 // pred_fallthru
        _
      %p216 = scmp.lt.s32.totalorder %s15, 4
      // Predicated region
      $region17: #{tpu_custom_call.1} parent=5 // pred_check
        %p217 = pneg %p216
      $region18: #{tpu_custom_call.1} parent=5 // pred_check_branch
        %219 = sbr.rel (%p217) target = $region20
      $region19: #{tpu_custom_call.1} parent=5 // pred_region
        // Predicated region
        $region21: #{tpu_custom_call.1} parent=19 // pred_check
          %p220 = pneg %p49
        $region22: #{tpu_custom_call.1} parent=19 // pred_check_branch
          %222 = sbr.rel (%p220) target = $region24
        $region23: #{tpu_custom_call.1} parent=19 // pred_region
          %s223 = smul.u32 8, %s23
          %s224 = ssub.s32 18, %s223
          %p225 = scmp.lt.s32.totalorder %s224, 8
          %s226 = scalar_select %p225, %s224, 8
          %s227 = smul.u32 8, %s226
          %s228 = smul.u32 %s227, 3
          %p229 = scmp.lt.s32.totalorder %s22, 1
          %s230 = scalar_select %p229, %s22, 1
          %p231 = scmp.lt.s32.totalorder %s223, 17
          %s232 = scalar_select %p231, %s223, 17
          %s233 = smul.addr %s232, 3
          %s234 = smul.addr %s230, 54
          %s235 = sadd.s32 %s233, %s234
          %s236 = smul.addr %s235, 8
          %s237 = scalar_lea.vmem %s0, %s236
          %s238 = smul.u32 8, %s23
          %s239 = ssub.s32 18, %s238
          %p240 = scmp.lt.s32.totalorder %s239, 8
          %s241 = scalar_select %p240, %s239, 8
          %s242 = smul.u32 8, %s241
          %s243 = smul.u32 %s242, 3
        $region24: #{tpu_custom_call.1} parent=19 // pred_fallthru
          _
        // Predicated region
        $region25: #{tpu_custom_call.1} parent=19 // pred_check
          %p244 = pneg %p81
        $region26: #{tpu_custom_call.1} parent=19 // pred_check_branch
          %246 = sbr.rel (%p244) target = $region28
        $region27: #{tpu_custom_call.1} parent=19 // pred_region
          %s247 = sadd.s32 %s23, 1
          %s248 = smul.u32 %s247, 8
          %p249 = scmp.lt.s32.totalorder %s22, 1
          %s250 = scalar_select %p249, %s22, 1
          %p251 = scmp.lt.s32.totalorder %s248, 17
          %s252 = scalar_select %p251, %s248, 17
          %s253 = smul.addr %s252, 3
          %s254 = smul.addr %s250, 54
          %s255 = sadd.s32 %s253, %s254
          %s256 = smul.addr %s255, 8
          %s257 = scalar_lea.vmem %s1, %s256
          %s258 = sadd.s32 %s23, 1
          %s259 = smul.u32 %s258, 8
        $region28: #{tpu_custom_call.1} parent=19 // pred_fallthru
          _
        // Predicated region
        $region29: #{tpu_custom_call.1} parent=19 // pred_check
          %p260 = pneg %p115
        $region30: #{tpu_custom_call.1} parent=19 // pred_check_branch
          %262 = sbr.rel (%p260) target = $region32
        $region31: #{tpu_custom_call.1} parent=19 // pred_region
          %s263 = sadd.s32 %s23, 1
          %s264 = smul.u32 %s263, 8
          %s265 = sadd.s32 %s264, 1
          %p266 = scmp.lt.s32.totalorder %s22, 1
          %s267 = scalar_select %p266, %s22, 1
          %p268 = scmp.lt.s32.totalorder %s265, 17
          %s269 = scalar_select %p268, %s265, 17
          %s270 = smul.addr %s269, 3
          %s271 = smul.addr %s267, 54
          %s272 = sadd.s32 %s270, %s271
          %s273 = smul.addr %s272, 8
          %s274 = scalar_lea.vmem %s2, %s273
          %s275 = sadd.s32 %s23, 1
          %s276 = smul.u32 %s275, 8
          %s277 = sadd.s32 %s276, 1
        $region32: #{tpu_custom_call.1} parent=19 // pred_fallthru
          _
      $region20: #{tpu_custom_call.1} parent=5 // pred_fallthru
        _
      %p278 = scmp.le.s32.totalorder 1, %s15
      %p279 = scmp.lt.s32.totalorder %s15, 5
      %p280 = pnand %p278, %p279
      %p281 = pneg %p280
      // Predicated region
      $region33: #{tpu_custom_call.1} parent=5 // pred_check
        _
      $region34: #{tpu_custom_call.1} parent=5 // pred_check_branch
        %283 = sbr.rel (%p280) target = $region36
      $region35: #{tpu_custom_call.1} parent=5 // pred_region
        %s284 = ssub.s32 %s15, 1
        %s285 = smul.u32 8, %s25
        %s286 = ssub.s32 18, %s285
        %p287 = scmp.lt.s32.totalorder %s286, 8
        %s288 = scalar_select %p287, %s286, 8
        %s289 = smul.u32 8, %s288
        %s290 = smul.u32 %s289, 3
        %p291 = scmp.lt.s32.totalorder %s24, 1
        %s292 = scalar_select %p291, %s24, 1
        %p293 = scmp.lt.s32.totalorder %s285, 17
        %s294 = scalar_select %p293, %s285, 17
        %s295 = smul.addr %s294, 3
        %s296 = smul.addr %s292, 54
        %s297 = sadd.s32 %s295, %s296
        %s298 = smul.addr %s297, 8
        %s299 = scalar_lea.vmem %s0, %s298
        %p300 = pneg %p55
        %p301 = pneg %p52
        %s302 = sadd.s32 %s25, 1
        %s303 = smul.u32 %s302, 8
        %p304 = scmp.lt.s32.totalorder %s24, 1
        %s305 = scalar_select %p304, %s24, 1
        %p306 = scmp.lt.s32.totalorder %s303, 17
        %s307 = scalar_select %p306, %s303, 17
        %s308 = smul.addr %s307, 3
        %s309 = smul.addr %s305, 54
        %s310 = sadd.s32 %s308, %s309
        %s311 = smul.addr %s310, 8
        %s312 = scalar_lea.vmem %s1, %s311
        %p313 = pneg %p87
        %p314 = pneg %p84
        %s315 = sadd.s32 %s25, 1
        %s316 = smul.u32 %s315, 8
        %s317 = sadd.s32 %s316, 1
        %p318 = scmp.lt.s32.totalorder %s24, 1
        %s319 = scalar_select %p318, %s24, 1
        %p320 = scmp.lt.s32.totalorder %s317, 17
        %s321 = scalar_select %p320, %s317, 17
        %s322 = smul.addr %s321, 3
        %s323 = smul.addr %s319, 54
        %s324 = sadd.s32 %s322, %s323
        %s325 = smul.addr %s324, 8
        %s326 = scalar_lea.vmem %s2, %s325
        %p327 = pneg %p121
        %p328 = pneg %p118
        %p329 = pneg %p142
        %p330 = pneg %p139
        %p331 = pneg %p170
        %p332 = pneg %p167
        %s333 = smul.u32 8, %s25
        %p334 = scmp.lt.s32.totalorder %s24, 1
        %s335 = scalar_select %p334, %s24, 1
        %p336 = scmp.lt.s32.totalorder %s333, 15
        %s337 = scalar_select %p336, %s333, 15
        %s338 = smul.addr %s337, 2
        %s339 = smul.addr %s335, 32
        %s340 = sadd.s32 %s338, %s339
        %s341 = smul.addr %s340, 8
        %s342 = scalar_lea.vmem %s4, %s341
        %p343 = pneg %p198
        %p344 = pneg %p195
        %s345 = sand.u32 %s185, 1
        %s346 = scalar_lea.sflag [#allocation3], %s345
        %s347 = sand.u32 %s185, 1
        %s348 = smul.addr %s347, 2
        %s349 = scalar_lea.vmem [#allocation2], %s348
        %s350 = smul.u32 8, %s25
        %s351 = ssub.s32 18, %s350
        %p352 = scmp.lt.s32.totalorder %s351, 8
        %s353 = scalar_select %p352, %s351, 8
        %s354 = smul.u32 8, %s353
        %s355 = smul.u32 %s354, 3
        %p356 = scmp.lt.s32.totalorder %s24, 1
        %s357 = scalar_select %p356, %s24, 1
        %p358 = scmp.lt.s32.totalorder %s350, 17
        %s359 = scalar_select %p358, %s350, 17
        %s360 = smul.addr %s359, 3
        %s361 = smul.addr %s357, 54
        %s362 = sadd.s32 %s360, %s361
        %s363 = smul.addr %s362, 8
        %s364 = scalar_lea.vmem %s0, %s363
        %s365 = smul.u32 8, %s25
        %s366 = ssub.s32 18, %s365
        %p367 = scmp.lt.s32.totalorder %s366, 8
        %s368 = scalar_select %p367, %s366, 8
        %s369 = smul.u32 8, %s368
        %s370 = smul.u32 %s369, 3
        %s371 = sadd.s32 %s25, 1
        %s372 = smul.u32 %s371, 8
        %p373 = scmp.lt.s32.totalorder %s24, 1
        %s374 = scalar_select %p373, %s24, 1
        %p375 = scmp.lt.s32.totalorder %s372, 17
        %s376 = scalar_select %p375, %s372, 17
        %s377 = smul.addr %s376, 3
        %s378 = smul.addr %s374, 54
        %s379 = sadd.s32 %s377, %s378
        %s380 = smul.addr %s379, 8
        %s381 = scalar_lea.vmem %s1, %s380
        %s382 = sadd.s32 %s25, 1
        %s383 = smul.u32 %s382, 8
        %s384 = sadd.s32 %s25, 1
        %s385 = smul.u32 %s384, 8
        %s386 = sadd.s32 %s385, 1
        %p387 = scmp.lt.s32.totalorder %s24, 1
        %s388 = scalar_select %p387, %s24, 1
        %p389 = scmp.lt.s32.totalorder %s386, 17
        %s390 = scalar_select %p389, %s386, 17
        %s391 = smul.addr %s390, 3
        %s392 = smul.addr %s388, 54
        %s393 = sadd.s32 %s391, %s392
        %s394 = smul.addr %s393, 8
        %s395 = scalar_lea.vmem %s2, %s394
        %s396 = sadd.s32 %s25, 1
        %s397 = smul.u32 %s396, 8
        %s398 = sadd.s32 %s397, 1
        %s399 = smul.u32 8, %s25
        %p400 = scmp.lt.s32.totalorder %s24, 1
        %s401 = scalar_select %p400, %s24, 1
        %p402 = scmp.lt.s32.totalorder %s399, 15
        %s403 = scalar_select %p402, %s399, 15
        %s404 = smul.addr %s403, 2
        %s405 = smul.addr %s401, 32
        %s406 = sadd.s32 %s404, %s405
        %s407 = smul.addr %s406, 8
        %s408 = scalar_lea.vmem %s4, %s407
        %s409 = smul.u32 8, %s25
        %v410 = vld [vmem:[%s364] sm:$0xff]
        %v411 = vld [vmem:[%s364 + $0x8] sm:$0xff]
        %v412 = vld [vmem:[%s364 + $0x10] sm:$0x3]
        %v413 = vld [vmem:[%s364 + $0x18] sm:$0xff]
        %v414 = vld [vmem:[%s364 + $0x20] sm:$0xff]
        %v415 = vld [vmem:[%s364 + $0x28] sm:$0x3]
        %v416 = vld [vmem:[%s364 + $0x30] sm:$0xff]
        %v417 = vld [vmem:[%s364 + $0x38] sm:$0xff]
        %v418 = vld [vmem:[%s364 + $0x40] sm:$0x3]
        %v419 = vld [vmem:[%s364 + $0x48] sm:$0xff]
        %v420 = vld [vmem:[%s364 + $0x50] sm:$0xff]
        %v421 = vld [vmem:[%s364 + $0x58] sm:$0x3]
        %v422 = vld [vmem:[%s364 + $0x60] sm:$0xff]
        %v423 = vld [vmem:[%s364 + $0x68] sm:$0xff]
        %v424 = vld [vmem:[%s364 + $0x70] sm:$0x3]
        %v425 = vld [vmem:[%s364 + $0x78] sm:$0xff]
        %v426 = vld [vmem:[%s364 + $0x80] sm:$0xff]
        %v427 = vld [vmem:[%s364 + $0x88] sm:$0x3]
        %v428 = vld [vmem:[%s364 + $0x90] sm:$0xff]
        %v429 = vld [vmem:[%s364 + $0x98] sm:$0xff]
        %v430 = vld [vmem:[%s364 + $0xa0] sm:$0x3]
        %v431 = vld [vmem:[%s364 + $0xa8] sm:$0xff]
        %v432 = vld [vmem:[%s364 + $0xb0] sm:$0xff]
        %v433 = vld [vmem:[%s364 + $0xb8] sm:$0x3]
        %v434 = vld [vmem:[%s381] sm:$0xff]
        %v435 = vld [vmem:[%s381 + $0x8] sm:$0xff]
        %v436 = vld [vmem:[%s381 + $0x10] sm:$0x3]
        %v437 = vld [vmem:[%s395] sm:$0xff]
        %v438 = vld [vmem:[%s395 + $0x8] sm:$0xff]
        %v439 = vld [vmem:[%s395 + $0x10] sm:$0x3]
        %v440 = vld [vmem:[%s3] sm:$0xf]
        %vm465 = vcmask 1046528
        %v466 = vrot.slane %v410, 1
        %v467 = vrot.slane %v411, 1
        %v468 = vsel %vm465, %v466, %v467
        %v469 = vrot.slane %v412, 1
        %v470 = vsel %vm465, %v467, %v469
        %v471 = vrot.slane %v413, 1
        %v472 = vrot.slane %v414, 1
        %v473 = vsel %vm465, %v471, %v472
        %v474 = vrot.slane %v415, 1
        %v475 = vsel %vm465, %v472, %v474
        %v476 = vrot.slane %v416, 1
        %v477 = vrot.slane %v417, 1
        %v478 = vsel %vm465, %v476, %v477
        %v479 = vrot.slane %v418, 1
        %v480 = vsel %vm465, %v477, %v479
        %v481 = vrot.slane %v419, 1
        %v482 = vrot.slane %v420, 1
        %v483 = vsel %vm465, %v481, %v482
        %v484 = vrot.slane %v421, 1
        %v485 = vsel %vm465, %v482, %v484
        %v486 = vrot.slane %v422, 1
        %v487 = vrot.slane %v423, 1
        %v488 = vsel %vm465, %v486, %v487
        %v489 = vrot.slane %v424, 1
        %v490 = vsel %vm465, %v487, %v489
        %v491 = vrot.slane %v425, 1
        %v492 = vrot.slane %v426, 1
        %v493 = vsel %vm465, %v491, %v492
        %v494 = vrot.slane %v427, 1
        %v495 = vsel %vm465, %v492, %v494
        %v496 = vrot.slane %v428, 1
        %v497 = vrot.slane %v429, 1
        %v498 = vsel %vm465, %v496, %v497
        %v499 = vrot.slane %v430, 1
        %v500 = vsel %vm465, %v497, %v499
        %v501 = vrot.slane %v431, 1
        %v502 = vrot.slane %v432, 1
        %v503 = vsel %vm465, %v501, %v502
        %v504 = vrot.slane %v433, 1
        %v505 = vsel %vm465, %v502, %v504
        %s506 = scalar_lea.vmem %s3, 4
        %v507 = vld [vmem:[%s506] sm:$0xf]
        %vm508 = vcmask 31744
        %v509 = vsel %vm508, %v468, 0
        %v511 = vsel %vm508, %v470, 0
        %v513 = vsel %vm508, %v473, 0
        %v515 = vsel %vm508, %v475, 0
        %v517 = vsel %vm508, %v478, 0
        %v519 = vsel %vm508, %v480, 0
        %v521 = vsel %vm508, %v483, 0
        %v523 = vsel %vm508, %v485, 0
        %v525 = vsel %vm508, %v488, 0
        %v527 = vsel %vm508, %v490, 0
        %v529 = vsel %vm508, %v493, 0
        %v531 = vsel %vm508, %v495, 0
        %v533 = vsel %vm508, %v498, 0
        %v535 = vsel %vm508, %v500, 0
        %v537 = vsel %vm508, %v503, 0
        %v539 = vsel %vm508, %v505, 0
        %vm541 = vcmask 1043456
        %v543 = vsel %vm541, %v507, 0
        %545 = vmatpush.msra.mxu0 0.0
        %546 = vmatpush.msra.mxu0 0.0
        %547 = vmatpush.msra.mxu0 0.0
        %548 = vmatpush.msra.mxu0 0.0
        %549 = vmatpush.msra.mxu0 0.0
        %550 = vmatpush.msra.mxu0 0.0
        %551 = vmatpush.msra.mxu0 0.0
        %552 = vmatpush.msra.mxu0 0.0
        %553 = vmatpush.msra.mxu0 0.0
        %554 = vmatpush.msra.mxu0 0.0
        %555 = vmatpush.msra.mxu0 0.0
        %556 = vmatpush.msra.mxu0 0.0
        %557 = vmatpush.msra.mxu0 0.0
        %558 = vmatpush.msra.mxu0 0.0
        %559 = vmatpush.msra.mxu0 0.0
        %560 = vmatpush.msra.mxu0 %v543
        %561 = vmatmul.f32.gmra.mxu0 %v509
        %v562 = vpop.f32.mrf.mxu0
        %v563 = vadd.f32 0.0, %v562
        %564 = vmatmul.f32.gmra.mxu0 %v511
        %v565 = vpop.f32.mrf.mxu0
        %v566 = vadd.f32 0.0, %v565
        %567 = vmatmul.f32.gmra.mxu0 %v513
        %v568 = vpop.f32.mrf.mxu0
        %v569 = vadd.f32 0.0, %v568
        %570 = vmatmul.f32.gmra.mxu0 %v515
        %v571 = vpop.f32.mrf.mxu0
        %v572 = vadd.f32 0.0, %v571
        %573 = vmatmul.f32.gmra.mxu0 %v517
        %v574 = vpop.f32.mrf.mxu0
        %v575 = vadd.f32 0.0, %v574
        %576 = vmatmul.f32.gmra.mxu0 %v519
        %v577 = vpop.f32.mrf.mxu0
        %v578 = vadd.f32 0.0, %v577
        %579 = vmatmul.f32.gmra.mxu0 %v521
        %v580 = vpop.f32.mrf.mxu0
        %v581 = vadd.f32 0.0, %v580
        %582 = vmatmul.f32.gmra.mxu0 %v523
        %v583 = vpop.f32.mrf.mxu0
        %v584 = vadd.f32 0.0, %v583
        %585 = vmatmul.f32.gmra.mxu0 %v525
        %v586 = vpop.f32.mrf.mxu0
        %v587 = vadd.f32 0.0, %v586
        %588 = vmatmul.f32.gmra.mxu0 %v527
        %v589 = vpop.f32.mrf.mxu0
        %v590 = vadd.f32 0.0, %v589
        %591 = vmatmul.f32.gmra.mxu0 %v529
        %v592 = vpop.f32.mrf.mxu0
        %v593 = vadd.f32 0.0, %v592
        %594 = vmatmul.f32.gmra.mxu0 %v531
        %v595 = vpop.f32.mrf.mxu0
        %v596 = vadd.f32 0.0, %v595
        %597 = vmatmul.f32.gmra.mxu0 %v533
        %v598 = vpop.f32.mrf.mxu0
        %v599 = vadd.f32 0.0, %v598
        %600 = vmatmul.f32.gmra.mxu0 %v535
        %v601 = vpop.f32.mrf.mxu0
        %v602 = vadd.f32 0.0, %v601
        %603 = vmatmul.f32.gmra.mxu0 %v537
        %v604 = vpop.f32.mrf.mxu0
        %v605 = vadd.f32 0.0, %v604
        %606 = vmatmul.f32.gmra.mxu0 %v539
        %v607 = vpop.f32.mrf.mxu0
        %v608 = vadd.f32 0.0, %v607
        %609 = vdwg.mxu0
        %v610 = vsel %vm508, %v410, 0
        %v612 = vsel %vm508, %v411, 0
        %v614 = vsel %vm508, %v413, 0
        %v616 = vsel %vm508, %v414, 0
        %v618 = vsel %vm508, %v416, 0
        %v620 = vsel %vm508, %v417, 0
        %v622 = vsel %vm508, %v419, 0
        %v624 = vsel %vm508, %v420, 0
        %v626 = vsel %vm508, %v422, 0
        %v628 = vsel %vm508, %v423, 0
        %v630 = vsel %vm508, %v425, 0
        %v632 = vsel %vm508, %v426, 0
        %v634 = vsel %vm508, %v428, 0
        %v636 = vsel %vm508, %v429, 0
        %v638 = vsel %vm508, %v431, 0
        %v640 = vsel %vm508, %v432, 0
        %v643 = vsel %vm541, %v440, 0
        %645 = vmatpush.msra.mxu0 0.0
        %646 = vmatpush.msra.mxu0 0.0
        %647 = vmatpush.msra.mxu0 0.0
        %648 = vmatpush.msra.mxu0 0.0
        %649 = vmatpush.msra.mxu0 0.0
        %650 = vmatpush.msra.mxu0 0.0
        %651 = vmatpush.msra.mxu0 0.0
        %652 = vmatpush.msra.mxu0 0.0
        %653 = vmatpush.msra.mxu0 0.0
        %654 = vmatpush.msra.mxu0 0.0
        %655 = vmatpush.msra.mxu0 0.0
        %656 = vmatpush.msra.mxu0 0.0
        %657 = vmatpush.msra.mxu0 0.0
        %658 = vmatpush.msra.mxu0 0.0
        %659 = vmatpush.msra.mxu0 0.0
        %660 = vmatpush.msra.mxu0 %v643
        %661 = vmatmul.f32.gmra.mxu0 %v610
        %v662 = vpop.f32.mrf.mxu0
        %v663 = vadd.f32 %v563, %v662
        %664 = vmatmul.f32.gmra.mxu0 %v612
        %v665 = vpop.f32.mrf.mxu0
        %v666 = vadd.f32 %v566, %v665
        %667 = vmatmul.f32.gmra.mxu0 %v614
        %v668 = vpop.f32.mrf.mxu0
        %v669 = vadd.f32 %v569, %v668
        %670 = vmatmul.f32.gmra.mxu0 %v616
        %v671 = vpop.f32.mrf.mxu0
        %v672 = vadd.f32 %v572, %v671
        %673 = vmatmul.f32.gmra.mxu0 %v618
        %v674 = vpop.f32.mrf.mxu0
        %v675 = vadd.f32 %v575, %v674
        %676 = vmatmul.f32.gmra.mxu0 %v620
        %v677 = vpop.f32.mrf.mxu0
        %v678 = vadd.f32 %v578, %v677
        %679 = vmatmul.f32.gmra.mxu0 %v622
        %v680 = vpop.f32.mrf.mxu0
        %v681 = vadd.f32 %v581, %v680
        %682 = vmatmul.f32.gmra.mxu0 %v624
        %v683 = vpop.f32.mrf.mxu0
        %v684 = vadd.f32 %v584, %v683
        %685 = vmatmul.f32.gmra.mxu0 %v626
        %v686 = vpop.f32.mrf.mxu0
        %v687 = vadd.f32 %v587, %v686
        %688 = vmatmul.f32.gmra.mxu0 %v628
        %v689 = vpop.f32.mrf.mxu0
        %v690 = vadd.f32 %v590, %v689
        %691 = vmatmul.f32.gmra.mxu0 %v630
        %v692 = vpop.f32.mrf.mxu0
        %v693 = vadd.f32 %v593, %v692
        %694 = vmatmul.f32.gmra.mxu0 %v632
        %v695 = vpop.f32.mrf.mxu0
        %v696 = vadd.f32 %v596, %v695
        %697 = vmatmul.f32.gmra.mxu0 %v634
        %v698 = vpop.f32.mrf.mxu0
        %v699 = vadd.f32 %v599, %v698
        %700 = vmatmul.f32.gmra.mxu0 %v636
        %v701 = vpop.f32.mrf.mxu0
        %v702 = vadd.f32 %v602, %v701
        %703 = vmatmul.f32.gmra.mxu0 %v638
        %v704 = vpop.f32.mrf.mxu0
        %v705 = vadd.f32 %v605, %v704
        %706 = vmatmul.f32.gmra.mxu0 %v640
        %v707 = vpop.f32.mrf.mxu0
        %v708 = vadd.f32 %v608, %v707
        %709 = vdwg.mxu0
        %vm710 = vcmask 1045504
        %v711 = vrot.slane %v410, 2
        %v712 = vrot.slane %v411, 2
        %v713 = vsel %vm710, %v711, %v712
        %v714 = vrot.slane %v412, 2
        %v715 = vsel %vm710, %v712, %v714
        %v716 = vrot.slane %v413, 2
        %v717 = vrot.slane %v414, 2
        %v718 = vsel %vm710, %v716, %v717
        %v719 = vrot.slane %v415, 2
        %v720 = vsel %vm710, %v717, %v719
        %v721 = vrot.slane %v416, 2
        %v722 = vrot.slane %v417, 2
        %v723 = vsel %vm710, %v721, %v722
        %v724 = vrot.slane %v418, 2
        %v725 = vsel %vm710, %v722, %v724
        %v726 = vrot.slane %v419, 2
        %v727 = vrot.slane %v420, 2
        %v728 = vsel %vm710, %v726, %v727
        %v729 = vrot.slane %v421, 2
        %v730 = vsel %vm710, %v727, %v729
        %v731 = vrot.slane %v422, 2
        %v732 = vrot.slane %v423, 2
        %v733 = vsel %vm710, %v731, %v732
        %v734 = vrot.slane %v424, 2
        %v735 = vsel %vm710, %v732, %v734
        %v736 = vrot.slane %v425, 2
        %v737 = vrot.slane %v426, 2
        %v738 = vsel %vm710, %v736, %v737
        %v739 = vrot.slane %v427, 2
        %v740 = vsel %vm710, %v737, %v739
        %v741 = vrot.slane %v428, 2
        %v742 = vrot.slane %v429, 2
        %v743 = vsel %vm710, %v741, %v742
        %v744 = vrot.slane %v430, 2
        %v745 = vsel %vm710, %v742, %v744
        %v746 = vrot.slane %v431, 2
        %v747 = vrot.slane %v432, 2
        %v748 = vsel %vm710, %v746, %v747
        %v749 = vrot.slane %v433, 2
        %v750 = vsel %vm710, %v747, %v749
        %s751 = scalar_lea.vmem %s3, 8
        %v752 = vld [vmem:[%s751] sm:$0xf]
        %v753 = vsel %vm508, %v713, 0
        %v755 = vsel %vm508, %v715, 0
        %v757 = vsel %vm508, %v718, 0
        %v759 = vsel %vm508, %v720, 0
        %v761 = vsel %vm508, %v723, 0
        %v763 = vsel %vm508, %v725, 0
        %v765 = vsel %vm508, %v728, 0
        %v767 = vsel %vm508, %v730, 0
        %v769 = vsel %vm508, %v733, 0
        %v771 = vsel %vm508, %v735, 0
        %v773 = vsel %vm508, %v738, 0
        %v775 = vsel %vm508, %v740, 0
        %v777 = vsel %vm508, %v743, 0
        %v779 = vsel %vm508, %v745, 0
        %v781 = vsel %vm508, %v748, 0
        %v783 = vsel %vm508, %v750, 0
        %v786 = vsel %vm541, %v752, 0
        %788 = vmatpush.msra.mxu0 0.0
        %789 = vmatpush.msra.mxu0 0.0
        %790 = vmatpush.msra.mxu0 0.0
        %791 = vmatpush.msra.mxu0 0.0
        %792 = vmatpush.msra.mxu0 0.0
        %793 = vmatpush.msra.mxu0 0.0
        %794 = vmatpush.msra.mxu0 0.0
        %795 = vmatpush.msra.mxu0 0.0
        %796 = vmatpush.msra.mxu0 0.0
        %797 = vmatpush.msra.mxu0 0.0
        %798 = vmatpush.msra.mxu0 0.0
        %799 = vmatpush.msra.mxu0 0.0
        %800 = vmatpush.msra.mxu0 0.0
        %801 = vmatpush.msra.mxu0 0.0
        %802 = vmatpush.msra.mxu0 0.0
        %803 = vmatpush.msra.mxu0 %v786
        %804 = vmatmul.f32.gmra.mxu0 %v753
        %v805 = vpop.f32.mrf.mxu0
        %v806 = vadd.f32 0.0, %v805
        %807 = vmatmul.f32.gmra.mxu0 %v755
        %v808 = vpop.f32.mrf.mxu0
        %v809 = vadd.f32 0.0, %v808
        %810 = vmatmul.f32.gmra.mxu0 %v757
        %v811 = vpop.f32.mrf.mxu0
        %v812 = vadd.f32 0.0, %v811
        %813 = vmatmul.f32.gmra.mxu0 %v759
        %v814 = vpop.f32.mrf.mxu0
        %v815 = vadd.f32 0.0, %v814
        %816 = vmatmul.f32.gmra.mxu0 %v761
        %v817 = vpop.f32.mrf.mxu0
        %v818 = vadd.f32 0.0, %v817
        %819 = vmatmul.f32.gmra.mxu0 %v763
        %v820 = vpop.f32.mrf.mxu0
        %v821 = vadd.f32 0.0, %v820
        %822 = vmatmul.f32.gmra.mxu0 %v765
        %v823 = vpop.f32.mrf.mxu0
        %v824 = vadd.f32 0.0, %v823
        %825 = vmatmul.f32.gmra.mxu0 %v767
        %v826 = vpop.f32.mrf.mxu0
        %v827 = vadd.f32 0.0, %v826
        %828 = vmatmul.f32.gmra.mxu0 %v769
        %v829 = vpop.f32.mrf.mxu0
        %v830 = vadd.f32 0.0, %v829
        %831 = vmatmul.f32.gmra.mxu0 %v771
        %v832 = vpop.f32.mrf.mxu0
        %v833 = vadd.f32 0.0, %v832
        %834 = vmatmul.f32.gmra.mxu0 %v773
        %v835 = vpop.f32.mrf.mxu0
        %v836 = vadd.f32 0.0, %v835
        %837 = vmatmul.f32.gmra.mxu0 %v775
        %v838 = vpop.f32.mrf.mxu0
        %v839 = vadd.f32 0.0, %v838
        %840 = vmatmul.f32.gmra.mxu0 %v777
        %v841 = vpop.f32.mrf.mxu0
        %v842 = vadd.f32 0.0, %v841
        %843 = vmatmul.f32.gmra.mxu0 %v779
        %v844 = vpop.f32.mrf.mxu0
        %v845 = vadd.f32 0.0, %v844
        %846 = vmatmul.f32.gmra.mxu0 %v781
        %v847 = vpop.f32.mrf.mxu0
        %v848 = vadd.f32 0.0, %v847
        %849 = vmatmul.f32.gmra.mxu0 %v783
        %v850 = vpop.f32.mrf.mxu0
        %v851 = vadd.f32 0.0, %v850
        %852 = vdwg.mxu0
        %v853 = vadd.f32 %v663, %v806
        %v854 = vadd.f32 %v666, %v809
        %v855 = vadd.f32 %v669, %v812
        %v856 = vadd.f32 %v672, %v815
        %v857 = vadd.f32 %v675, %v818
        %v858 = vadd.f32 %v678, %v821
        %v859 = vadd.f32 %v681, %v824
        %v860 = vadd.f32 %v684, %v827
        %v861 = vadd.f32 %v687, %v830
        %v862 = vadd.f32 %v690, %v833
        %v863 = vadd.f32 %v693, %v836
        %v864 = vadd.f32 %v696, %v839
        %v865 = vadd.f32 %v699, %v842
        %v866 = vadd.f32 %v702, %v845
        %v867 = vadd.f32 %v705, %v848
        %v868 = vadd.f32 %v708, %v851
        %s869 = scalar_lea.vmem %s3, 12
        %v870 = vld [vmem:[%s869] sm:$0xf]
        %v872 = vsel %vm508, %v434, 0
        %v875 = vsel %vm508, %v435, 0
        %v878 = vsel %vm541, %v870, 0
        %880 = vmatpush.msra.mxu0 0.0
        %881 = vmatpush.msra.mxu0 0.0
        %882 = vmatpush.msra.mxu0 0.0
        %883 = vmatpush.msra.mxu0 0.0
        %884 = vmatpush.msra.mxu0 0.0
        %885 = vmatpush.msra.mxu0 0.0
        %886 = vmatpush.msra.mxu0 0.0
        %887 = vmatpush.msra.mxu0 0.0
        %888 = vmatpush.msra.mxu0 0.0
        %889 = vmatpush.msra.mxu0 0.0
        %890 = vmatpush.msra.mxu0 0.0
        %891 = vmatpush.msra.mxu0 0.0
        %892 = vmatpush.msra.mxu0 0.0
        %893 = vmatpush.msra.mxu0 0.0
        %894 = vmatpush.msra.mxu0 0.0
        %895 = vmatpush.msra.mxu0 %v878
        %896 = vmatmul.f32.gmra.mxu0 %v614
        %v897 = vpop.f32.mrf.mxu0
        %v898 = vadd.f32 0.0, %v897
        %899 = vmatmul.f32.gmra.mxu0 %v616
        %v900 = vpop.f32.mrf.mxu0
        %v901 = vadd.f32 0.0, %v900
        %902 = vmatmul.f32.gmra.mxu0 %v618
        %v903 = vpop.f32.mrf.mxu0
        %v904 = vadd.f32 0.0, %v903
        %905 = vmatmul.f32.gmra.mxu0 %v620
        %v906 = vpop.f32.mrf.mxu0
        %v907 = vadd.f32 0.0, %v906
        %908 = vmatmul.f32.gmra.mxu0 %v622
        %v909 = vpop.f32.mrf.mxu0
        %v910 = vadd.f32 0.0, %v909
        %911 = vmatmul.f32.gmra.mxu0 %v624
        %v912 = vpop.f32.mrf.mxu0
        %v913 = vadd.f32 0.0, %v912
        %914 = vmatmul.f32.gmra.mxu0 %v626
        %v915 = vpop.f32.mrf.mxu0
        %v916 = vadd.f32 0.0, %v915
        %917 = vmatmul.f32.gmra.mxu0 %v628
        %v918 = vpop.f32.mrf.mxu0
        %v919 = vadd.f32 0.0, %v918
        %920 = vmatmul.f32.gmra.mxu0 %v630
        %v921 = vpop.f32.mrf.mxu0
        %v922 = vadd.f32 0.0, %v921
        %923 = vmatmul.f32.gmra.mxu0 %v632
        %v924 = vpop.f32.mrf.mxu0
        %v925 = vadd.f32 0.0, %v924
        %926 = vmatmul.f32.gmra.mxu0 %v634
        %v927 = vpop.f32.mrf.mxu0
        %v928 = vadd.f32 0.0, %v927
        %929 = vmatmul.f32.gmra.mxu0 %v636
        %v930 = vpop.f32.mrf.mxu0
        %v931 = vadd.f32 0.0, %v930
        %932 = vmatmul.f32.gmra.mxu0 %v638
        %v933 = vpop.f32.mrf.mxu0
        %v934 = vadd.f32 0.0, %v933
        %935 = vmatmul.f32.gmra.mxu0 %v640
        %v936 = vpop.f32.mrf.mxu0
        %v937 = vadd.f32 0.0, %v936
        %938 = vmatmul.f32.gmra.mxu0 %v872
        %v939 = vpop.f32.mrf.mxu0
        %v940 = vadd.f32 0.0, %v939
        %941 = vmatmul.f32.gmra.mxu0 %v875
        %v942 = vpop.f32.mrf.mxu0
        %v943 = vadd.f32 0.0, %v942
        %944 = vdwg.mxu0
        %v945 = vadd.f32 %v853, %v898
        %v946 = vadd.f32 %v854, %v901
        %v947 = vadd.f32 %v855, %v904
        %v948 = vadd.f32 %v856, %v907
        %v949 = vadd.f32 %v857, %v910
        %v950 = vadd.f32 %v858, %v913
        %v951 = vadd.f32 %v859, %v916
        %v952 = vadd.f32 %v860, %v919
        %v953 = vadd.f32 %v861, %v922
        %v954 = vadd.f32 %v862, %v925
        %v955 = vadd.f32 %v863, %v928
        %v956 = vadd.f32 %v864, %v931
        %v957 = vadd.f32 %v865, %v934
        %v958 = vadd.f32 %v866, %v937
        %v959 = vadd.f32 %v867, %v940
        %v960 = vadd.f32 %v868, %v943
        %v962 = vrot.slane %v434, 1
        %v963 = vrot.slane %v435, 1
        %v964 = vsel %vm465, %v962, %v963
        %v965 = vrot.slane %v436, 1
        %v966 = vsel %vm465, %v963, %v965
        %s967 = scalar_lea.vmem %s3, 16
        %v968 = vld [vmem:[%s967] sm:$0xf]
        %v969 = vsel %vm508, %v964, 0
        %v971 = vsel %vm508, %v966, 0
        %v974 = vsel %vm541, %v968, 0
        %976 = vmatpush.msra.mxu0 0.0
        %977 = vmatpush.msra.mxu0 0.0
        %978 = vmatpush.msra.mxu0 0.0
        %979 = vmatpush.msra.mxu0 0.0
        %980 = vmatpush.msra.mxu0 0.0
        %981 = vmatpush.msra.mxu0 0.0
        %982 = vmatpush.msra.mxu0 0.0
        %983 = vmatpush.msra.mxu0 0.0
        %984 = vmatpush.msra.mxu0 0.0
        %985 = vmatpush.msra.mxu0 0.0
        %986 = vmatpush.msra.mxu0 0.0
        %987 = vmatpush.msra.mxu0 0.0
        %988 = vmatpush.msra.mxu0 0.0
        %989 = vmatpush.msra.mxu0 0.0
        %990 = vmatpush.msra.mxu0 0.0
        %991 = vmatpush.msra.mxu0 %v974
        %992 = vmatmul.f32.gmra.mxu0 %v513
        %v993 = vpop.f32.mrf.mxu0
        %v994 = vadd.f32 0.0, %v993
        %995 = vmatmul.f32.gmra.mxu0 %v515
        %v996 = vpop.f32.mrf.mxu0
        %v997 = vadd.f32 0.0, %v996
        %998 = vmatmul.f32.gmra.mxu0 %v517
        %v999 = vpop.f32.mrf.mxu0
        %v1000 = vadd.f32 0.0, %v999
        %1001 = vmatmul.f32.gmra.mxu0 %v519
        %v1002 = vpop.f32.mrf.mxu0
        %v1003 = vadd.f32 0.0, %v1002
        %1004 = vmatmul.f32.gmra.mxu0 %v521
        %v1005 = vpop.f32.mrf.mxu0
        %v1006 = vadd.f32 0.0, %v1005
        %1007 = vmatmul.f32.gmra.mxu0 %v523
        %v1008 = vpop.f32.mrf.mxu0
        %v1009 = vadd.f32 0.0, %v1008
        %1010 = vmatmul.f32.gmra.mxu0 %v525
        %v1011 = vpop.f32.mrf.mxu0
        %v1012 = vadd.f32 0.0, %v1011
        %1013 = vmatmul.f32.gmra.mxu0 %v527
        %v1014 = vpop.f32.mrf.mxu0
        %v1015 = vadd.f32 0.0, %v1014
        %1016 = vmatmul.f32.gmra.mxu0 %v529
        %v1017 = vpop.f32.mrf.mxu0
        %v1018 = vadd.f32 0.0, %v1017
        %1019 = vmatmul.f32.gmra.mxu0 %v531
        %v1020 = vpop.f32.mrf.mxu0
        %v1021 = vadd.f32 0.0, %v1020
        %1022 = vmatmul.f32.gmra.mxu0 %v533
        %v1023 = vpop.f32.mrf.mxu0
        %v1024 = vadd.f32 0.0, %v1023
        %1025 = vmatmul.f32.gmra.mxu0 %v535
        %v1026 = vpop.f32.mrf.mxu0
        %v1027 = vadd.f32 0.0, %v1026
        %1028 = vmatmul.f32.gmra.mxu0 %v537
        %v1029 = vpop.f32.mrf.mxu0
        %v1030 = vadd.f32 0.0, %v1029
        %1031 = vmatmul.f32.gmra.mxu0 %v539
        %v1032 = vpop.f32.mrf.mxu0
        %v1033 = vadd.f32 0.0, %v1032
        %1034 = vmatmul.f32.gmra.mxu0 %v969
        %v1035 = vpop.f32.mrf.mxu0
        %v1036 = vadd.f32 0.0, %v1035
        %1037 = vmatmul.f32.gmra.mxu0 %v971
        %v1038 = vpop.f32.mrf.mxu0
        %v1039 = vadd.f32 0.0, %v1038
        %1040 = vdwg.mxu0
        %v1041 = vadd.f32 %v945, %v994
        %v1042 = vadd.f32 %v946, %v997
        %v1043 = vadd.f32 %v947, %v1000
        %v1044 = vadd.f32 %v948, %v1003
        %v1045 = vadd.f32 %v949, %v1006
        %v1046 = vadd.f32 %v950, %v1009
        %v1047 = vadd.f32 %v951, %v1012
        %v1048 = vadd.f32 %v952, %v1015
        %v1049 = vadd.f32 %v953, %v1018
        %v1050 = vadd.f32 %v954, %v1021
        %v1051 = vadd.f32 %v955, %v1024
        %v1052 = vadd.f32 %v956, %v1027
        %v1053 = vadd.f32 %v957, %v1030
        %v1054 = vadd.f32 %v958, %v1033
        %v1055 = vadd.f32 %v959, %v1036
        %v1056 = vadd.f32 %v960, %v1039
        %v1057 = vrot.slane %v434, 2
        %v1058 = vrot.slane %v435, 2
        %v1059 = vsel %vm710, %v1057, %v1058
        %v1060 = vrot.slane %v436, 2
        %v1061 = vsel %vm710, %v1058, %v1060
        %s1062 = scalar_lea.vmem %s3, 20
        %v1063 = vld [vmem:[%s1062] sm:$0xf]
        %v1064 = vsel %vm508, %v1059, 0
        %v1066 = vsel %vm508, %v1061, 0
        %v1069 = vsel %vm541, %v1063, 0
        %1071 = vmatpush.msra.mxu0 0.0
        %1072 = vmatpush.msra.mxu0 0.0
        %1073 = vmatpush.msra.mxu0 0.0
        %1074 = vmatpush.msra.mxu0 0.0
        %1075 = vmatpush.msra.mxu0 0.0
        %1076 = vmatpush.msra.mxu0 0.0
        %1077 = vmatpush.msra.mxu0 0.0
        %1078 = vmatpush.msra.mxu0 0.0
        %1079 = vmatpush.msra.mxu0 0.0
        %1080 = vmatpush.msra.mxu0 0.0
        %1081 = vmatpush.msra.mxu0 0.0
        %1082 = vmatpush.msra.mxu0 0.0
        %1083 = vmatpush.msra.mxu0 0.0
        %1084 = vmatpush.msra.mxu0 0.0
        %1085 = vmatpush.msra.mxu0 0.0
        %1086 = vmatpush.msra.mxu0 %v1069
        %1087 = vmatmul.f32.gmra.mxu0 %v757
        %v1088 = vpop.f32.mrf.mxu0
        %v1089 = vadd.f32 0.0, %v1088
        %1090 = vmatmul.f32.gmra.mxu0 %v759
        %v1091 = vpop.f32.mrf.mxu0
        %v1092 = vadd.f32 0.0, %v1091
        %1093 = vmatmul.f32.gmra.mxu0 %v761
        %v1094 = vpop.f32.mrf.mxu0
        %v1095 = vadd.f32 0.0, %v1094
        %1096 = vmatmul.f32.gmra.mxu0 %v763
        %v1097 = vpop.f32.mrf.mxu0
        %v1098 = vadd.f32 0.0, %v1097
        %1099 = vmatmul.f32.gmra.mxu0 %v765
        %v1100 = vpop.f32.mrf.mxu0
        %v1101 = vadd.f32 0.0, %v1100
        %1102 = vmatmul.f32.gmra.mxu0 %v767
        %v1103 = vpop.f32.mrf.mxu0
        %v1104 = vadd.f32 0.0, %v1103
        %1105 = vmatmul.f32.gmra.mxu0 %v769
        %v1106 = vpop.f32.mrf.mxu0
        %v1107 = vadd.f32 0.0, %v1106
        %1108 = vmatmul.f32.gmra.mxu0 %v771
        %v1109 = vpop.f32.mrf.mxu0
        %v1110 = vadd.f32 0.0, %v1109
        %1111 = vmatmul.f32.gmra.mxu0 %v773
        %v1112 = vpop.f32.mrf.mxu0
        %v1113 = vadd.f32 0.0, %v1112
        %1114 = vmatmul.f32.gmra.mxu0 %v775
        %v1115 = vpop.f32.mrf.mxu0
        %v1116 = vadd.f32 0.0, %v1115
        %1117 = vmatmul.f32.gmra.mxu0 %v777
        %v1118 = vpop.f32.mrf.mxu0
        %v1119 = vadd.f32 0.0, %v1118
        %1120 = vmatmul.f32.gmra.mxu0 %v779
        %v1121 = vpop.f32.mrf.mxu0
        %v1122 = vadd.f32 0.0, %v1121
        %1123 = vmatmul.f32.gmra.mxu0 %v781
        %v1124 = vpop.f32.mrf.mxu0
        %v1125 = vadd.f32 0.0, %v1124
        %1126 = vmatmul.f32.gmra.mxu0 %v783
        %v1127 = vpop.f32.mrf.mxu0
        %v1128 = vadd.f32 0.0, %v1127
        %1129 = vmatmul.f32.gmra.mxu0 %v1064
        %v1130 = vpop.f32.mrf.mxu0
        %v1131 = vadd.f32 0.0, %v1130
        %1132 = vmatmul.f32.gmra.mxu0 %v1066
        %v1133 = vpop.f32.mrf.mxu0
        %v1134 = vadd.f32 0.0, %v1133
        %1135 = vdwg.mxu0
        %v1136 = vadd.f32 %v1041, %v1089
        %v1137 = vadd.f32 %v1042, %v1092
        %v1138 = vadd.f32 %v1043, %v1095
        %v1139 = vadd.f32 %v1044, %v1098
        %v1140 = vadd.f32 %v1045, %v1101
        %v1141 = vadd.f32 %v1046, %v1104
        %v1142 = vadd.f32 %v1047, %v1107
        %v1143 = vadd.f32 %v1048, %v1110
        %v1144 = vadd.f32 %v1049, %v1113
        %v1145 = vadd.f32 %v1050, %v1116
        %v1146 = vadd.f32 %v1051, %v1119
        %v1147 = vadd.f32 %v1052, %v1122
        %v1148 = vadd.f32 %v1053, %v1125
        %v1149 = vadd.f32 %v1054, %v1128
        %v1150 = vadd.f32 %v1055, %v1131
        %v1151 = vadd.f32 %v1056, %v1134
        %s1152 = scalar_lea.vmem %s3, 24
        %v1153 = vld [vmem:[%s1152] sm:$0xf]
        %v1155 = vsel %vm508, %v437, 0
        %v1158 = vsel %vm508, %v438, 0
        %v1161 = vsel %vm541, %v1153, 0
        %1163 = vmatpush.msra.mxu0 0.0
        %1164 = vmatpush.msra.mxu0 0.0
        %1165 = vmatpush.msra.mxu0 0.0
        %1166 = vmatpush.msra.mxu0 0.0
        %1167 = vmatpush.msra.mxu0 0.0
        %1168 = vmatpush.msra.mxu0 0.0
        %1169 = vmatpush.msra.mxu0 0.0
        %1170 = vmatpush.msra.mxu0 0.0
        %1171 = vmatpush.msra.mxu0 0.0
        %1172 = vmatpush.msra.mxu0 0.0
        %1173 = vmatpush.msra.mxu0 0.0
        %1174 = vmatpush.msra.mxu0 0.0
        %1175 = vmatpush.msra.mxu0 0.0
        %1176 = vmatpush.msra.mxu0 0.0
        %1177 = vmatpush.msra.mxu0 0.0
        %1178 = vmatpush.msra.mxu0 %v1161
        %1179 = vmatmul.f32.gmra.mxu0 %v618
        %v1180 = vpop.f32.mrf.mxu0
        %v1181 = vadd.f32 0.0, %v1180
        %1182 = vmatmul.f32.gmra.mxu0 %v620
        %v1183 = vpop.f32.mrf.mxu0
        %v1184 = vadd.f32 0.0, %v1183
        %1185 = vmatmul.f32.gmra.mxu0 %v622
        %v1186 = vpop.f32.mrf.mxu0
        %v1187 = vadd.f32 0.0, %v1186
        %1188 = vmatmul.f32.gmra.mxu0 %v624
        %v1189 = vpop.f32.mrf.mxu0
        %v1190 = vadd.f32 0.0, %v1189
        %1191 = vmatmul.f32.gmra.mxu0 %v626
        %v1192 = vpop.f32.mrf.mxu0
        %v1193 = vadd.f32 0.0, %v1192
        %1194 = vmatmul.f32.gmra.mxu0 %v628
        %v1195 = vpop.f32.mrf.mxu0
        %v1196 = vadd.f32 0.0, %v1195
        %1197 = vmatmul.f32.gmra.mxu0 %v630
        %v1198 = vpop.f32.mrf.mxu0
        %v1199 = vadd.f32 0.0, %v1198
        %1200 = vmatmul.f32.gmra.mxu0 %v632
        %v1201 = vpop.f32.mrf.mxu0
        %v1202 = vadd.f32 0.0, %v1201
        %1203 = vmatmul.f32.gmra.mxu0 %v634
        %v1204 = vpop.f32.mrf.mxu0
        %v1205 = vadd.f32 0.0, %v1204
        %1206 = vmatmul.f32.gmra.mxu0 %v636
        %v1207 = vpop.f32.mrf.mxu0
        %v1208 = vadd.f32 0.0, %v1207
        %1209 = vmatmul.f32.gmra.mxu0 %v638
        %v1210 = vpop.f32.mrf.mxu0
        %v1211 = vadd.f32 0.0, %v1210
        %1212 = vmatmul.f32.gmra.mxu0 %v640
        %v1213 = vpop.f32.mrf.mxu0
        %v1214 = vadd.f32 0.0, %v1213
        %1215 = vmatmul.f32.gmra.mxu0 %v872
        %v1216 = vpop.f32.mrf.mxu0
        %v1217 = vadd.f32 0.0, %v1216
        %1218 = vmatmul.f32.gmra.mxu0 %v875
        %v1219 = vpop.f32.mrf.mxu0
        %v1220 = vadd.f32 0.0, %v1219
        %1221 = vmatmul.f32.gmra.mxu0 %v1155
        %v1222 = vpop.f32.mrf.mxu0
        %v1223 = vadd.f32 0.0, %v1222
        %1224 = vmatmul.f32.gmra.mxu0 %v1158
        %v1225 = vpop.f32.mrf.mxu0
        %v1226 = vadd.f32 0.0, %v1225
        %1227 = vdwg.mxu0
        %v1228 = vadd.f32 %v1136, %v1181
        %v1229 = vadd.f32 %v1137, %v1184
        %v1230 = vadd.f32 %v1138, %v1187
        %v1231 = vadd.f32 %v1139, %v1190
        %v1232 = vadd.f32 %v1140, %v1193
        %v1233 = vadd.f32 %v1141, %v1196
        %v1234 = vadd.f32 %v1142, %v1199
        %v1235 = vadd.f32 %v1143, %v1202
        %v1236 = vadd.f32 %v1144, %v1205
        %v1237 = vadd.f32 %v1145, %v1208
        %v1238 = vadd.f32 %v1146, %v1211
        %v1239 = vadd.f32 %v1147, %v1214
        %v1240 = vadd.f32 %v1148, %v1217
        %v1241 = vadd.f32 %v1149, %v1220
        %v1242 = vadd.f32 %v1150, %v1223
        %v1243 = vadd.f32 %v1151, %v1226
        %v1245 = vrot.slane %v437, 1
        %v1246 = vrot.slane %v438, 1
        %v1247 = vsel %vm465, %v1245, %v1246
        %v1248 = vrot.slane %v439, 1
        %v1249 = vsel %vm465, %v1246, %v1248
        %s1250 = scalar_lea.vmem %s3, 28
        %v1251 = vld [vmem:[%s1250] sm:$0xf]
        %v1252 = vsel %vm508, %v1247, 0
        %v1254 = vsel %vm508, %v1249, 0
        %v1257 = vsel %vm541, %v1251, 0
        %1259 = vmatpush.msra.mxu0 0.0
        %1260 = vmatpush.msra.mxu0 0.0
        %1261 = vmatpush.msra.mxu0 0.0
        %1262 = vmatpush.msra.mxu0 0.0
        %1263 = vmatpush.msra.mxu0 0.0
        %1264 = vmatpush.msra.mxu0 0.0
        %1265 = vmatpush.msra.mxu0 0.0
        %1266 = vmatpush.msra.mxu0 0.0
        %1267 = vmatpush.msra.mxu0 0.0
        %1268 = vmatpush.msra.mxu0 0.0
        %1269 = vmatpush.msra.mxu0 0.0
        %1270 = vmatpush.msra.mxu0 0.0
        %1271 = vmatpush.msra.mxu0 0.0
        %1272 = vmatpush.msra.mxu0 0.0
        %1273 = vmatpush.msra.mxu0 0.0
        %1274 = vmatpush.msra.mxu0 %v1257
        %1275 = vmatmul.f32.gmra.mxu0 %v517
        %v1276 = vpop.f32.mrf.mxu0
        %v1277 = vadd.f32 0.0, %v1276
        %1278 = vmatmul.f32.gmra.mxu0 %v519
        %v1279 = vpop.f32.mrf.mxu0
        %v1280 = vadd.f32 0.0, %v1279
        %1281 = vmatmul.f32.gmra.mxu0 %v521
        %v1282 = vpop.f32.mrf.mxu0
        %v1283 = vadd.f32 0.0, %v1282
        %1284 = vmatmul.f32.gmra.mxu0 %v523
        %v1285 = vpop.f32.mrf.mxu0
        %v1286 = vadd.f32 0.0, %v1285
        %1287 = vmatmul.f32.gmra.mxu0 %v525
        %v1288 = vpop.f32.mrf.mxu0
        %v1289 = vadd.f32 0.0, %v1288
        %1290 = vmatmul.f32.gmra.mxu0 %v527
        %v1291 = vpop.f32.mrf.mxu0
        %v1292 = vadd.f32 0.0, %v1291
        %1293 = vmatmul.f32.gmra.mxu0 %v529
        %v1294 = vpop.f32.mrf.mxu0
        %v1295 = vadd.f32 0.0, %v1294
        %1296 = vmatmul.f32.gmra.mxu0 %v531
        %v1297 = vpop.f32.mrf.mxu0
        %v1298 = vadd.f32 0.0, %v1297
        %1299 = vmatmul.f32.gmra.mxu0 %v533
        %v1300 = vpop.f32.mrf.mxu0
        %v1301 = vadd.f32 0.0, %v1300
        %1302 = vmatmul.f32.gmra.mxu0 %v535
        %v1303 = vpop.f32.mrf.mxu0
        %v1304 = vadd.f32 0.0, %v1303
        %1305 = vmatmul.f32.gmra.mxu0 %v537
        %v1306 = vpop.f32.mrf.mxu0
        %v1307 = vadd.f32 0.0, %v1306
        %1308 = vmatmul.f32.gmra.mxu0 %v539
        %v1309 = vpop.f32.mrf.mxu0
        %v1310 = vadd.f32 0.0, %v1309
        %1311 = vmatmul.f32.gmra.mxu0 %v969
        %v1312 = vpop.f32.mrf.mxu0
        %v1313 = vadd.f32 0.0, %v1312
        %1314 = vmatmul.f32.gmra.mxu0 %v971
        %v1315 = vpop.f32.mrf.mxu0
        %v1316 = vadd.f32 0.0, %v1315
        %1317 = vmatmul.f32.gmra.mxu0 %v1252
        %v1318 = vpop.f32.mrf.mxu0
        %v1319 = vadd.f32 0.0, %v1318
        %1320 = vmatmul.f32.gmra.mxu0 %v1254
        %v1321 = vpop.f32.mrf.mxu0
        %v1322 = vadd.f32 0.0, %v1321
        %1323 = vdwg.mxu0
        %v1324 = vadd.f32 %v1228, %v1277
        %v1325 = vadd.f32 %v1229, %v1280
        %v1326 = vadd.f32 %v1230, %v1283
        %v1327 = vadd.f32 %v1231, %v1286
        %v1328 = vadd.f32 %v1232, %v1289
        %v1329 = vadd.f32 %v1233, %v1292
        %v1330 = vadd.f32 %v1234, %v1295
        %v1331 = vadd.f32 %v1235, %v1298
        %v1332 = vadd.f32 %v1236, %v1301
        %v1333 = vadd.f32 %v1237, %v1304
        %v1334 = vadd.f32 %v1238, %v1307
        %v1335 = vadd.f32 %v1239, %v1310
        %v1336 = vadd.f32 %v1240, %v1313
        %v1337 = vadd.f32 %v1241, %v1316
        %v1338 = vadd.f32 %v1242, %v1319
        %v1339 = vadd.f32 %v1243, %v1322
        %v1340 = vrot.slane %v437, 2
        %v1341 = vrot.slane %v438, 2
        %v1342 = vsel %vm710, %v1340, %v1341
        %v1343 = vrot.slane %v439, 2
        %v1344 = vsel %vm710, %v1341, %v1343
        %s1345 = scalar_lea.vmem %s3, 32
        %v1346 = vld [vmem:[%s1345] sm:$0xf]
        %v1347 = vsel %vm508, %v1342, 0
        %v1349 = vsel %vm508, %v1344, 0
        %v1352 = vsel %vm541, %v1346, 0
        %1354 = vmatpush.msra.mxu0 0.0
        %1355 = vmatpush.msra.mxu0 0.0
        %1356 = vmatpush.msra.mxu0 0.0
        %1357 = vmatpush.msra.mxu0 0.0
        %1358 = vmatpush.msra.mxu0 0.0
        %1359 = vmatpush.msra.mxu0 0.0
        %1360 = vmatpush.msra.mxu0 0.0
        %1361 = vmatpush.msra.mxu0 0.0
        %1362 = vmatpush.msra.mxu0 0.0
        %1363 = vmatpush.msra.mxu0 0.0
        %1364 = vmatpush.msra.mxu0 0.0
        %1365 = vmatpush.msra.mxu0 0.0
        %1366 = vmatpush.msra.mxu0 0.0
        %1367 = vmatpush.msra.mxu0 0.0
        %1368 = vmatpush.msra.mxu0 0.0
        %1369 = vmatpush.msra.mxu0 %v1352
        %1370 = vmatmul.f32.gmra.mxu0 %v761
        %v1371 = vpop.f32.mrf.mxu0
        %v1372 = vadd.f32 0.0, %v1371
        %1373 = vmatmul.f32.gmra.mxu0 %v763
        %v1374 = vpop.f32.mrf.mxu0
        %v1375 = vadd.f32 0.0, %v1374
        %1376 = vmatmul.f32.gmra.mxu0 %v765
        %v1377 = vpop.f32.mrf.mxu0
        %v1378 = vadd.f32 0.0, %v1377
        %1379 = vmatmul.f32.gmra.mxu0 %v767
        %v1380 = vpop.f32.mrf.mxu0
        %v1381 = vadd.f32 0.0, %v1380
        %1382 = vmatmul.f32.gmra.mxu0 %v769
        %v1383 = vpop.f32.mrf.mxu0
        %v1384 = vadd.f32 0.0, %v1383
        %1385 = vmatmul.f32.gmra.mxu0 %v771
        %v1386 = vpop.f32.mrf.mxu0
        %v1387 = vadd.f32 0.0, %v1386
        %1388 = vmatmul.f32.gmra.mxu0 %v773
        %v1389 = vpop.f32.mrf.mxu0
        %v1390 = vadd.f32 0.0, %v1389
        %1391 = vmatmul.f32.gmra.mxu0 %v775
        %v1392 = vpop.f32.mrf.mxu0
        %v1393 = vadd.f32 0.0, %v1392
        %1394 = vmatmul.f32.gmra.mxu0 %v777
        %v1395 = vpop.f32.mrf.mxu0
        %v1396 = vadd.f32 0.0, %v1395
        %1397 = vmatmul.f32.gmra.mxu0 %v779
        %v1398 = vpop.f32.mrf.mxu0
        %v1399 = vadd.f32 0.0, %v1398
        %1400 = vmatmul.f32.gmra.mxu0 %v781
        %v1401 = vpop.f32.mrf.mxu0
        %v1402 = vadd.f32 0.0, %v1401
        %1403 = vmatmul.f32.gmra.mxu0 %v783
        %v1404 = vpop.f32.mrf.mxu0
        %v1405 = vadd.f32 0.0, %v1404
        %1406 = vmatmul.f32.gmra.mxu0 %v1064
        %v1407 = vpop.f32.mrf.mxu0
        %v1408 = vadd.f32 0.0, %v1407
        %1409 = vmatmul.f32.gmra.mxu0 %v1066
        %v1410 = vpop.f32.mrf.mxu0
        %v1411 = vadd.f32 0.0, %v1410
        %1412 = vmatmul.f32.gmra.mxu0 %v1347
        %v1413 = vpop.f32.mrf.mxu0
        %v1414 = vadd.f32 0.0, %v1413
        %1415 = vmatmul.f32.gmra.mxu0 %v1349
        %v1416 = vpop.f32.mrf.mxu0
        %v1417 = vadd.f32 0.0, %v1416
        %1418 = vdwg.mxu0
        %v1419 = vadd.f32 %v1324, %v1372
        %v1420 = vadd.f32 %v1325, %v1375
        %v1421 = vadd.f32 %v1326, %v1378
        %v1422 = vadd.f32 %v1327, %v1381
        %v1423 = vadd.f32 %v1328, %v1384
        %v1424 = vadd.f32 %v1329, %v1387
        %v1425 = vadd.f32 %v1330, %v1390
        %v1426 = vadd.f32 %v1331, %v1393
        %v1427 = vadd.f32 %v1332, %v1396
        %v1428 = vadd.f32 %v1333, %v1399
        %v1429 = vadd.f32 %v1334, %v1402
        %v1430 = vadd.f32 %v1335, %v1405
        %v1431 = vadd.f32 %v1336, %v1408
        %v1432 = vadd.f32 %v1337, %v1411
        %v1433 = vadd.f32 %v1338, %v1414
        %v1434 = vadd.f32 %v1339, %v1417
        %vm1435 = vcmask 64512
        %1436 = vst.msk [vmem:[%s408] sm:$0xff] %vm1435, %v1419
        %1437 = vst.msk [vmem:[%s408 + $0x8] sm:$0xff] %vm1435, %v1420
        %1438 = vst.msk [vmem:[%s408 + $0x10] sm:$0xff] %vm1435, %v1421
        %1439 = vst.msk [vmem:[%s408 + $0x18] sm:$0xff] %vm1435, %v1422
        %1440 = vst.msk [vmem:[%s408 + $0x20] sm:$0xff] %vm1435, %v1423
        %1441 = vst.msk [vmem:[%s408 + $0x28] sm:$0xff] %vm1435, %v1424
        %1442 = vst.msk [vmem:[%s408 + $0x30] sm:$0xff] %vm1435, %v1425
        %1443 = vst.msk [vmem:[%s408 + $0x38] sm:$0xff] %vm1435, %v1426
        %1444 = vst.msk [vmem:[%s408 + $0x40] sm:$0xff] %vm1435, %v1427
        %1445 = vst.msk [vmem:[%s408 + $0x48] sm:$0xff] %vm1435, %v1428
        %1446 = vst.msk [vmem:[%s408 + $0x50] sm:$0xff] %vm1435, %v1429
        %1447 = vst.msk [vmem:[%s408 + $0x58] sm:$0xff] %vm1435, %v1430
        %1448 = vst.msk [vmem:[%s408 + $0x60] sm:$0xff] %vm1435, %v1431
        %1449 = vst.msk [vmem:[%s408 + $0x68] sm:$0xff] %vm1435, %v1432
        %1450 = vst.msk [vmem:[%s408 + $0x70] sm:$0xff] %vm1435, %v1433
        %1451 = vst.msk [vmem:[%s408 + $0x78] sm:$0xff] %vm1435, %v1434
        %v1452 = vsel %vm1435, %v1419, 0.0
        %v1453 = vsel %vm1435, %v1420, 0.0
        %v1454 = vadd.f32 %v1452, %v1453
        %v1455 = vsel %vm1435, %v1421, 0.0
        %v1456 = vadd.f32 %v1454, %v1455
        %v1457 = vsel %vm1435, %v1422, 0.0
        %v1458 = vadd.f32 %v1456, %v1457
        %v1459 = vsel %vm1435, %v1423, 0.0
        %v1460 = vadd.f32 %v1458, %v1459
        %v1461 = vsel %vm1435, %v1424, 0.0
        %v1462 = vadd.f32 %v1460, %v1461
        %v1463 = vsel %vm1435, %v1425, 0.0
        %v1464 = vadd.f32 %v1462, %v1463
        %v1465 = vsel %vm1435, %v1426, 0.0
        %v1466 = vadd.f32 %v1464, %v1465
        %v1467 = vsel %vm1435, %v1427, 0.0
        %v1468 = vadd.f32 %v1466, %v1467
        %v1469 = vsel %vm1435, %v1428, 0.0
        %v1470 = vadd.f32 %v1468, %v1469
        %v1471 = vsel %vm1435, %v1429, 0.0
        %v1472 = vadd.f32 %v1470, %v1471
        %v1473 = vsel %vm1435, %v1430, 0.0
        %v1474 = vadd.f32 %v1472, %v1473
        %v1475 = vsel %vm1435, %v1431, 0.0
        %v1476 = vadd.f32 %v1474, %v1475
        %v1477 = vsel %vm1435, %v1432, 0.0
        %v1478 = vadd.f32 %v1476, %v1477
        %v1479 = vsel %vm1435, %v1433, 0.0
        %v1480 = vadd.f32 %v1478, %v1479
        %v1481 = vsel %vm1435, %v1434, 0.0
        %v1482 = vadd.f32 %v1480, %v1481
        %v1483 = vrot.slane %v1482, 4
        %v1484 = vadd.f32 %v1482, %v1483
        %v1485 = vrot.slane %v1484, 2
        %v1486 = vadd.f32 %v1484, %v1485
        %v1487 = vrot.slane %v1486, 1
        %v1488 = vadd.f32 %v1486, %v1487
        %v1489 = vrcp.pop 128.0
        %v1490 = vmul.f32 128.0, %v1489
        %v1491 = vsub.f32 1.0, %v1490
        %v1492 = vmul.f32 %v1489, %v1491
        %v1493 = vadd.f32 %v1489, %v1492
        %vm1494 = vweird.f32 %v1489
        %v1495 = vsel %vm1494, %v1489, %v1493
        %v1496 = vmul.f32 %v1488, %v1495
        %v1497 = vsub.f32 %v1419, %v1496
        %v1498 = vsub.f32 %v1420, %v1496
        %v1499 = vsub.f32 %v1421, %v1496
        %v1500 = vsub.f32 %v1422, %v1496
        %v1501 = vsub.f32 %v1423, %v1496
        %v1502 = vsub.f32 %v1424, %v1496
        %v1503 = vsub.f32 %v1425, %v1496
        %v1504 = vsub.f32 %v1426, %v1496
        %v1505 = vsub.f32 %v1427, %v1496
        %v1506 = vsub.f32 %v1428, %v1496
        %v1507 = vsub.f32 %v1429, %v1496
        %v1508 = vsub.f32 %v1430, %v1496
        %v1509 = vsub.f32 %v1431, %v1496
        %v1510 = vsub.f32 %v1432, %v1496
        %v1511 = vsub.f32 %v1433, %v1496
        %v1512 = vsub.f32 %v1434, %v1496
        %v1513 = vmul.f32 %v1497, %v1497
        %v1514 = vmul.f32 %v1498, %v1498
        %v1515 = vmul.f32 %v1499, %v1499
        %v1516 = vmul.f32 %v1500, %v1500
        %v1517 = vmul.f32 %v1501, %v1501
        %v1518 = vmul.f32 %v1502, %v1502
        %v1519 = vmul.f32 %v1503, %v1503
        %v1520 = vmul.f32 %v1504, %v1504
        %v1521 = vmul.f32 %v1505, %v1505
        %v1522 = vmul.f32 %v1506, %v1506
        %v1523 = vmul.f32 %v1507, %v1507
        %v1524 = vmul.f32 %v1508, %v1508
        %v1525 = vmul.f32 %v1509, %v1509
        %v1526 = vmul.f32 %v1510, %v1510
        %v1527 = vmul.f32 %v1511, %v1511
        %v1528 = vmul.f32 %v1512, %v1512
        %v1529 = vsel %vm1435, %v1513, 0.0
        %v1530 = vsel %vm1435, %v1514, 0.0
        %v1531 = vadd.f32 %v1529, %v1530
        %v1532 = vsel %vm1435, %v1515, 0.0
        %v1533 = vadd.f32 %v1531, %v1532
        %v1534 = vsel %vm1435, %v1516, 0.0
        %v1535 = vadd.f32 %v1533, %v1534
        %v1536 = vsel %vm1435, %v1517, 0.0
        %v1537 = vadd.f32 %v1535, %v1536
        %v1538 = vsel %vm1435, %v1518, 0.0
        %v1539 = vadd.f32 %v1537, %v1538
        %v1540 = vsel %vm1435, %v1519, 0.0
        %v1541 = vadd.f32 %v1539, %v1540
        %v1542 = vsel %vm1435, %v1520, 0.0
        %v1543 = vadd.f32 %v1541, %v1542
        %v1544 = vsel %vm1435, %v1521, 0.0
        %v1545 = vadd.f32 %v1543, %v1544
        %v1546 = vsel %vm1435, %v1522, 0.0
        %v1547 = vadd.f32 %v1545, %v1546
        %v1548 = vsel %vm1435, %v1523, 0.0
        %v1549 = vadd.f32 %v1547, %v1548
        %v1550 = vsel %vm1435, %v1524, 0.0
        %v1551 = vadd.f32 %v1549, %v1550
        %v1552 = vsel %vm1435, %v1525, 0.0
        %v1553 = vadd.f32 %v1551, %v1552
        %v1554 = vsel %vm1435, %v1526, 0.0
        %v1555 = vadd.f32 %v1553, %v1554
        %v1556 = vsel %vm1435, %v1527, 0.0
        %v1557 = vadd.f32 %v1555, %v1556
        %v1558 = vsel %vm1435, %v1528, 0.0
        %v1559 = vadd.f32 %v1557, %v1558
        %v1560 = vrot.slane %v1559, 4
        %v1561 = vadd.f32 %v1559, %v1560
        %v1562 = vrot.slane %v1561, 2
        %v1563 = vadd.f32 %v1561, %v1562
        %v1564 = vrot.slane %v1563, 1
        %v1565 = vadd.f32 %v1563, %v1564
        %vm1566 = vcmask 1040384
        %v1567 = vsel %vm1566, %v1496, %v1565
        %vm1568 = vcmask 58368
        %1569 = vst.msk [vmem:[%s349] sm:$0x3] %vm1568, %v1567
        %s1570 = smul.u32 8, %s25
        %p1571 = scmp.lt.s32.totalorder %s24, 1
        %s1572 = scalar_select %p1571, %s24, 1
        %p1573 = scmp.lt.s32.totalorder %s1570, 15
        %s1574 = scalar_select %p1573, %s1570, 15
        %s1575 = smul.addr %s1574, 2
        %s1576 = smul.addr %s1572, 32
        %s1577 = sadd.s32 %s1575, %s1576
        %s1578 = smul.addr %s1577, 8
        %s1579 = scalar_lea.vmem %s4, %s1578
        %s1580 = sand.u32 %s185, 1
        %s1581 = scalar_lea.sflag [#allocation3], %s1580
        %s1582 = sand.u32 %s185, 1
        %s1583 = smul.addr %s1582, 2
        %s1584 = scalar_lea.vmem [#allocation2], %s1583
        // Predicated region
        $region37: #{tpu_custom_call.1} parent=35 // pred_check
          %p1585 = pneg %p167
        $region38: #{tpu_custom_call.1} parent=35 // pred_check_branch
          %1587 = sbr.rel (%p1585) target = $region40
        $region39: #{tpu_custom_call.1} parent=35 // pred_region
          %s1588 = smul.u32 8, %s25
        $region40: #{tpu_custom_call.1} parent=35 // pred_fallthru
          _
        // Predicated region
        $region41: #{tpu_custom_call.1} parent=35 // pred_check
          %p1589 = pneg %p195
        $region42: #{tpu_custom_call.1} parent=35 // pred_check_branch
          %1591 = sbr.rel (%p1589) target = $region44
        $region43: #{tpu_custom_call.1} parent=35 // pred_region
          %1593 = vsyncadd %s1581, 0
          %s1594 = smul.addr %s24, 2
          %s1595 = sadd.s32 %s25, %s1594
          %s1596 = smul.addr %s1595, 2
          %s1597 = scalar_lea.hbm %s5, %s1596
          %s1599 = sshll.u32 %s1584, 4
          %s1600 = int_to_ptr.vmem [resolvable:$true] %s1599
          %s1601 = sshll.u32 %s1597, 4
          %s1602 = int_to_ptr.hbm [resolvable:$true] %s1601
          %1604 = dma.vmem_to_hbm [thread:$0]  %s1600, 32, %s1602, %s1581
        $region44: #{tpu_custom_call.1} parent=35 // pred_fallthru
          _
      $region36: #{tpu_custom_call.1} parent=5 // pred_fallthru
        _
      %p1605 = scmp.le.s32.totalorder 2, %s15
      // Predicated region
      $region45: #{tpu_custom_call.1} parent=5 // pred_check
        %p1606 = pneg %p1605
      $region46: #{tpu_custom_call.1} parent=5 // pred_check_branch
        %1608 = sbr.rel (%p1606) target = $region48
      $region47: #{tpu_custom_call.1} parent=5 // pred_region
        %s1609 = ssub.s32 %s15, 2
        // Predicated region
        $region49: #{tpu_custom_call.1} parent=47 // pred_check
          %p1610 = pneg %p173
        $region50: #{tpu_custom_call.1} parent=47 // pred_check_branch
          %1612 = sbr.rel (%p1610) target = $region52
        $region51: #{tpu_custom_call.1} parent=47 // pred_region
          %s1613 = smul.u32 8, %s27
          %p1614 = scmp.lt.s32.totalorder %s26, 1
          %s1615 = scalar_select %p1614, %s26, 1
          %p1616 = scmp.lt.s32.totalorder %s1613, 15
          %s1617 = scalar_select %p1616, %s1613, 15
          %s1618 = smul.addr %s1617, 2
          %s1619 = smul.addr %s1615, 32
          %s1620 = sadd.s32 %s1618, %s1619
          %s1621 = smul.addr %s1620, 8
          %s1622 = scalar_lea.vmem %s4, %s1621
        $region52: #{tpu_custom_call.1} parent=47 // pred_fallthru
          _
        // Predicated region
        $region53: #{tpu_custom_call.1} parent=47 // pred_check
          %p1623 = pneg %p201
        $region54: #{tpu_custom_call.1} parent=47 // pred_check_branch
          %1625 = sbr.rel (%p1623) target = $region56
        $region55: #{tpu_custom_call.1} parent=47 // pred_region
          %s1626 = sand.u32 %s186, 1
          %s1627 = scalar_lea.sflag [#allocation3], %s1626
          %s1628 = sand.u32 %s186, 1
          %s1629 = smul.addr %s1628, 2
          %s1630 = scalar_lea.vmem [#allocation2], %s1629
          %1632 = dma.done %s1627, 32
        $region56: #{tpu_custom_call.1} parent=47 // pred_fallthru
          _
      $region48: #{tpu_custom_call.1} parent=5 // pred_fallthru
        _
    $region6: #{tpu_custom_call.1} parent=1 // loop_footer
      %s19 = sadd.s32 1, %s15
    $region7: #{tpu_custom_call.1} parent=1 // loop_footer_branch
      %14 = sbr.rel target = $region3
    $region8: #{tpu_custom_call.1} parent=1 // loop_exit
      _
    %1633 = vsyncpa [#allocation3], 1
    %s1634 = scalar_lea.sflag [#allocation3], 1
    %1635 = vsyncpa %s1634, 1

</llo_original>
